<compile_context>
chip_gen: v7x
topology: tpu7x:2x2x1
jax: 0.10.0
libtpu: 0.0.40
codegen_flags: <defaults>
</compile_context>

<pallas_src>
import functools

import numpy as np
import jax
import jax.numpy as jnp
from jax import lax
from jax.experimental import pallas as pl
from jax.experimental.pallas import tpu as pltpu

_BN_EPS = 1e-5


# ----------------------------------------------------------------- utilities
def _round_up(x, m):
    return ((x + m - 1) // m) * m


def _vmem_limit_bytes():
    # v5e/v6e: 128 MiB physical VMEM -> 96 MiB budget; v7x: 64 MiB/TC -> 48 MiB.
    try:
        cap = int(pltpu.get_tpu_info().vmem_capacity_bytes)
    except Exception:
        cap = 64 * 1024 * 1024
    return max(32 * 1024 * 1024, min(3 * cap // 4, 96 * 1024 * 1024))


_VMEM_LIMIT = _vmem_limit_bytes()


def _k_plan(k):
    """Returns (padded K, k-tile or None). None => single K tile, no k grid axis."""
    if k <= 4096:
        return _round_up(k, 128), None
    return _round_up(k, 512), 512


# ----------------------------------------------------------------- Pallas kernel
def _mm_kernel(*refs, has_pre, pre_relu, has_post, post_relu, has_res, has_k):
    """Fused  y = post( pre(a) @ b )  with optional residual add.

    pre(a)  = relu?(a * ps + pb)          per-K-column (pre-activation BN), optional
    post(z) = relu?(z * qs + qb [+ res])  per-N-column (post BN / bias), optional
    """
    idx = 0
    a_ref = refs[idx]; idx += 1
    b_ref = refs[idx]; idx += 1
    if has_pre:
        ps_ref = refs[idx]; pb_ref = refs[idx + 1]; idx += 2
    if has_post:
        qs_ref = refs[idx]; qb_ref = refs[idx + 1]; idx += 2
    if has_res:
        res_ref = refs[idx]; idx += 1
    o_ref = refs[idx]; idx += 1
    acc_ref = refs[idx] if has_k else None

    a = a_ref[...]
    if has_pre:
        a = a.astype(jnp.float32) * ps_ref[...] + pb_ref[...]
        if pre_relu:
            a = jnp.maximum(a, 0.0)
        a = a.astype(jnp.bfloat16)
    part = jnp.dot(a, b_ref[...], preferred_element_type=jnp.float32)

    def epilogue(acc):
        y = acc
        if has_post:
            y = y * qs_ref[...] + qb_ref[...]
        if has_res:
            y = y + res_ref[...].astype(jnp.float32)
        if post_relu:
            y = jnp.maximum(y, 0.0)
        o_ref[...] = y.astype(o_ref.dtype)

    if has_k:
        @pl.when(pl.program_id(2) == 0)
        def _():
            acc_ref[...] = jnp.zeros_like(acc_ref)

        acc_ref[...] += part

        @pl.when(pl.program_id(2) == pl.num_programs(2) - 1)
        def _():
            epilogue(acc_ref[...])
    else:
        epilogue(part)


def fused_matmul(a, op, residual=None, out_dtype=jnp.bfloat16):
    """a: (M, K); op: prepared operator dict (padded bf16 weight + fused affines)."""
    M, K = a.shape
    assert K == op['K'], (K, op['K'])
    Kp, Np, tk, N = op['Kp'], op['Np'], op['tk'], op['N']

    # M tiling (bf16 sublane packing -> multiples of 16).
    if M <= 256:
        Mp = _round_up(M, 32)
        tm = Mp // 2                # >= 2 parallel M blocks: keeps both v7x TCs busy
    elif M <= 2048:
        tm = 128
        Mp = _round_up(M, tm)
    else:
        tm = 512                    # big-M trunk layers: fewer, longer grid steps
        Mp = _round_up(M, tm)
    tn = 256 if Np % 256 == 0 else 128

    a = a.astype(jnp.bfloat16)
    if (Mp, Kp) != (M, K):
        a = jnp.pad(a, ((0, Mp - M), (0, Kp - K)))

    has_res = residual is not None
    if has_res:
        r = residual.astype(jnp.float32)
        if r.shape != (Mp, Np):
            r = jnp.pad(r, ((0, Mp - r.shape[0]), (0, Np - r.shape[1])))

    has_k = tk is not None
    has_pre, has_post = op['has_pre'], op['has_post']
    kernel = functools.partial(
        _mm_kernel, has_pre=has_pre, pre_relu=op['pre_relu'],
        has_post=has_post, post_relu=op['post_relu'],
        has_res=has_res, has_k=has_k)

    if has_k:
        grid = (Mp // tm, Np // tn, Kp // tk)
        a_spec = pl.BlockSpec((tm, tk), lambda i, j, k: (i, k))
        b_spec = pl.BlockSpec((tk, tn), lambda i, j, k: (k, j))
        p_spec = pl.BlockSpec((1, tk), lambda i, j, k: (0, k))
        q_spec = pl.BlockSpec((1, tn), lambda i, j, k: (0, j))
        mn_spec = pl.BlockSpec((tm, tn), lambda i, j, k: (i, j))
        scratch = [pltpu.VMEM((tm, tn), jnp.float32)]
        dims = ("parallel", "parallel", "arbitrary")
    else:
        grid = (Mp // tm, Np // tn)
        a_spec = pl.BlockSpec((tm, Kp), lambda i, j: (i, 0))
        b_spec = pl.BlockSpec((Kp, tn), lambda i, j: (0, j))
        p_spec = pl.BlockSpec((1, Kp), lambda i, j: (0, 0))
        q_spec = pl.BlockSpec((1, tn), lambda i, j: (0, j))
        mn_spec = pl.BlockSpec((tm, tn), lambda i, j: (i, j))
        scratch = []
        dims = ("parallel", "parallel")

    args = [a, op['w']]
    in_specs = [a_spec, b_spec]
    if has_pre:
        args += [op['ps'], op['pb']]
        in_specs += [p_spec, p_spec]
    if has_post:
        args += [op['qs'], op['qb']]
        in_specs += [q_spec, q_spec]
    if has_res:
        args.append(r)
        in_specs.append(mn_spec)

    out = pl.pallas_call(
        kernel,
        out_shape=jax.ShapeDtypeStruct((Mp, Np), out_dtype),
        grid_spec=pltpu.PrefetchScalarGridSpec(
            num_scalar_prefetch=0, grid=grid,
            in_specs=in_specs, out_specs=mn_spec,
            scratch_shapes=scratch),
        compiler_params=pltpu.CompilerParams(
            dimension_semantics=dims,
            vmem_limit_bytes=_VMEM_LIMIT),
    )(*args)

    if (Mp, Np) != (M, N):
        out = out[:M, :N]
    return out


# ----------------------------------------------------------------- conv / pooling glue
def conv_op(x, op, residual=None, out_dtype=jnp.bfloat16):
    """x: (N, H, W, C) bf16 NHWC.  Applies (fused pre-BN/ReLU) conv (fused post)."""
    n, h, w, c = x.shape
    assert c == op['I'], (c, op['I'])
    kh, kw, stride, pad = op['KH'], op['KW'], op['stride'], op['pad']
    if kh == 1 and kw == 1 and stride == 1 and pad == 0:
        oh, ow = h, w
        a = x.reshape(n * h * w, c)
    else:
        oh = (h + 2 * pad - kh) // stride + 1
        ow = (w + 2 * pad - kw) // stride + 1
        xp = jnp.pad(x, ((0, 0), (pad, pad), (pad, pad), (0, 0)))
        # TODO(synk): im2col is materialized in HBM (bf16); a tap-as-reduction-axis
        # kernel with in-kernel shifted views would remove this extra traffic.
        cols = [xp[:, i:i + stride * oh:stride, j:j + stride * ow:stride, :]
                for i in range(kh) for j in range(kw)]
        a = jnp.stack(cols, axis=3).reshape(n * oh * ow, kh * kw * c)
    res = None if residual is None else residual.reshape(n * oh * ow, op['N'])
    y = fused_matmul(a, op, residual=res, out_dtype=out_dtype)
    return y.reshape(n, oh, ow, op['N'])


# TODO(synk): pooling windows left in JAX glue (minor vs. the matmul hot path).
def maxpool_3x3_s2_p1(x):
    return lax.reduce_window(x, jnp.asarray(-jnp.inf, x.dtype), lax.max,
                             (1, 3, 3, 1), (1, 2, 2, 1),
                             ((0, 0), (1, 1), (1, 1), (0, 0)))


def avgpool_2x2_s2(x):
    s = lax.reduce_window(x.astype(jnp.float32), 0.0, lax.add,
                          (1, 2, 2, 1), (1, 2, 2, 1), 'VALID')
    return (s * 0.25).astype(x.dtype)


# ----------------------------------------------------------------- parameter prep (synthetic, deterministic)
_RNG = np.random.default_rng(0)


def _conv_w(o, i, kh, kw):
    std = float(np.sqrt(2.0 / (i * kh * kw)))
    return _RNG.normal(0.0, std, size=(o, i, kh, kw)).astype(np.float32)


def _bn_affine(c):
    gamma = (1.0 + 0.1 * _RNG.normal(size=(c,))).astype(np.float32)
    beta = (0.1 * _RNG.normal(size=(c,))).astype(np.float32)
    mean = (0.1 * _RNG.normal(size=(c,))).astype(np.float32)
    var = (0.8 + 0.4 * _RNG.random(size=(c,))).astype(np.float32)
    scale = gamma / np.sqrt(var + _BN_EPS)
    bias = beta - mean * scale
    return scale.astype(np.float32), bias.astype(np.float32)


def _linear_w(o, i):
    bound = float(1.0 / np.sqrt(i))
    w = _RNG.uniform(-bound, bound, size=(o, i)).astype(np.float32)
    b = _RNG.uniform(-bound, bound, size=(o,)).astype(np.float32)
    return w, b


def _prep_conv(w, stride, pad, pre=None, pre_relu=False, post=None, post_relu=False):
    """w: (O, I, KH, KW) float32 numpy.  Builds a device-ready op: bf16 weight in
    (kh*kw*I, O) matmul layout padded to (Kp, Np) plus padded fused affines."""
    o, i, kh, kw = w.shape
    k = kh * kw * i
    kp, tk = _k_plan(k)
    npad = _round_up(o, 128)
    wm = np.transpose(w, (2, 3, 1, 0)).reshape(k, o).astype(np.float32)  # rows = (kh,kw,i)

    qs_n = np.ones((o,), np.float32) if post is None else post[0].astype(np.float32)
    qb_n = np.zeros((o,), np.float32) if post is None else post[1].astype(np.float32)
    has_post = post is not None

    has_pre = pre is not None
    ps_k = pb_k = None
    if pre is not None:
        ps_k = np.tile(pre[0].astype(np.float32), kh * kw)   # (kh,kw,c) im2col order
        pb_k = np.tile(pre[1].astype(np.float32), kh * kw)
        if not pre_relu:
            # No ReLU between the affine and the conv -> fold it into weights/bias
            # in f32 before the bf16 cast:  (a*ps + pb) @ W = a @ (ps*W) + pb @ W
            qb_n = qb_n + qs_n * (pb_k @ wm)
            wm = wm * ps_k[:, None]
            has_pre = False
            has_post = True
            ps_k = pb_k = None

    wp = np.zeros((kp, npad), np.float32)
    wp[:k, :o] = wm

    op = dict(w=jnp.asarray(wp, jnp.bfloat16), K=k, N=o, Kp=kp, Np=npad, tk=tk,
              I=i, KH=kh, KW=kw, stride=stride, pad=pad,
              has_pre=has_pre, pre_relu=bool(pre_relu and has_pre),
              has_post=has_post, post_relu=post_relu)
    if has_pre:
        ps = np.zeros((1, kp), np.float32); ps[0, :k] = ps_k
        pb = np.zeros((1, kp), np.float32); pb[0, :k] = pb_k
        op['ps'] = jnp.asarray(ps)
        op['pb'] = jnp.asarray(pb)
    if has_post:
        qs = np.zeros((1, npad), np.float32); qs[0, :o] = qs_n
        qb = np.zeros((1, npad), np.float32); qb[0, :o] = qb_n
        op['qs'] = jnp.asarray(qs)
        op['qb'] = jnp.asarray(qb)
    return op


def _prep_linear(w, b, relu):
    o, _ = w.shape
    return _prep_conv(w[:, :, None, None], stride=1, pad=0,
                      post=(np.ones((o,), np.float32), b), post_relu=relu)


def init_model(num_classes=6):
    block_cfg = (6, 12, 24, 16)
    growth, bn_size = 32, 4
    p = {}

    # conv0: RGB branch uses the "pretrained" 3-channel filter; the gray branch
    # is its 0.299/0.587/0.114 channel combination (matches the torch module).
    w_rgb = _conv_w(64, 3, 7, 7)
    w_gray = (0.299 * w_rgb[:, 0] + 0.587 * w_rgb[:, 1]
              + 0.114 * w_rgb[:, 2])[:, None, :, :]
    s0, b0 = _bn_affine(64)
    p['conv0_rgb'] = _prep_conv(w_rgb, 2, 3, post=(s0, b0), post_relu=True)
    p['conv0_gray'] = _prep_conv(w_gray, 2, 3, post=(s0, b0), post_relu=True)

    # Dense blocks + transitions; every trunk weight is shared by all 3 branches.
    ch = 64
    blocks, trans = [], []
    for bi, n_layers in enumerate(block_cfg):
        layers = []
        for _ in range(n_layers):
            s1, b1 = _bn_affine(ch)
            w1 = _conv_w(bn_size * growth, ch, 1, 1)
            s2, b2 = _bn_affine(bn_size * growth)
            w2 = _conv_w(growth, bn_size * growth, 3, 3)
            layers.append(dict(
                # norm1+ReLU fused as conv1 prologue; norm2+ReLU MOVED into conv1's
                # epilogue (conv2's input is exactly conv1's output) so conv2 is a
                # plain 3x3 matmul with no per-K affine on the 9x im2col tile.
                conv1=_prep_conv(w1, 1, 0, pre=(s1, b1), pre_relu=True,
                                 post=(s2, b2), post_relu=True),
                conv2=_prep_conv(w2, 1, 1)))
            ch += growth
        blocks.append(layers)
        if bi != len(block_cfg) - 1:
            st, bt = _bn_affine(ch)
            trans.append(_prep_conv(_conv_w(ch // 2, ch, 1, 1), 1, 0,
                                    pre=(st, bt), pre_relu=True))
            ch //= 2
    p['blocks'] = blocks
    p['trans'] = trans

    # norm5 (end of .features, no ReLU) is folded into the fusion-head weights.
    s5, b5 = _bn_affine(ch)               # ch == 1024
    s5x3, b5x3 = np.tile(s5, 3), np.tile(b5, 3)

    s_bn1, b_bn1 = _bn_affine(256)
    s_bn2, b_bn2 = _bn_affine(128)
    s_dbn, b_dbn = _bn_affine(128)
    p['conv1_fusion'] = _prep_conv(_conv_w(256, 3 * ch, 3, 3), 1, 1,
                                   pre=(s5x3, b5x3), pre_relu=False,   # folded at init
                                   post=(s_bn1, b_bn1), post_relu=True)
    p['conv2_fusion'] = _prep_conv(_conv_w(128, 256, 3, 3), 1, 1,
                                   post=(s_bn2, b_bn2), post_relu=True)
    p['down_conv'] = _prep_conv(_conv_w(128, 3 * ch, 1, 1), 1, 0,
                                pre=(s5x3, b5x3), pre_relu=False,      # folded at init
                                post=(s_dbn, b_dbn), post_relu=False)
    p['conv_fusion'] = _prep_conv(_conv_w(64, 128, 1, 1), 1, 0, post_relu=True)

    w, b = _linear_w(512, 64 * 7 * 7)
    p['fc1'] = _prep_linear(w, b, True)
    w, b = _linear_w(256, 512)
    p['fc2'] = _prep_linear(w, b, True)
    w, b = _linear_w(num_classes, 256)
    p['fc3'] = _prep_linear(w, b, False)
    return p


# ----------------------------------------------------------------- DenseNet trunk + forward
def dense_layer(x, lp):
    h = conv_op(x, lp['conv1'])      # norm1+ReLU prologue, 1x1 -> 128, norm2+ReLU epilogue
    h = conv_op(h, lp['conv2'])      # plain 3x3 conv -> growth 32 (no affine at all)
    # TODO(synk): per-layer concat still re-copies the growing feature map.
    return jnp.concatenate([x, h], axis=-1)


def trunk_features(h, p):
    """Shared DenseNet-121 trunk (after conv0 / maxpool), batch = 3*B."""
    for bi, layers in enumerate(p['blocks']):
        for lp in layers:
            h = dense_layer(h, lp)
        if bi < len(p['trans']):
            h = conv_op(h, p['trans'][bi])      # transition norm+ReLU fused prologue
            h = avgpool_2x2_s2(h)
    return h                                    # (3B, 7, 7, 1024); norm5 deferred


def densenet121_fusion_forward(x1_nchw, x2_nchw, x3_nchw, p):
    to_nhwc = lambda t: jnp.transpose(t, (0, 2, 3, 1)).astype(jnp.bfloat16)
    bsz = x1_nchw.shape[0]

    # conv0 per input (different first-layer weights), then batch the three
    # branches through the weight-shared trunk in one pass (3x weight reuse).
    f_rgb = conv_op(to_nhwc(x1_nchw), p['conv0_rgb'])                 # (B,112,112,64)
    gray_in = jnp.concatenate([to_nhwc(x2_nchw), to_nhwc(x3_nchw)], axis=0)
    f_gray = conv_op(gray_in, p['conv0_gray'])                        # (2B,112,112,64)
    h = jnp.concatenate([f_rgb, f_gray], axis=0)                      # (3B,112,112,64)
    h = maxpool_3x3_s2_p1(h)                                          # (3B,56,56,64)
    h = trunk_features(h, p)                                          # (3B,7,7,1024)

    # branch-batched -> channel concat (torch.cat((x1, x2, x3), dim=1))
    c = h.shape[-1]
    x = jnp.transpose(h.reshape(3, bsz, 7, 7, c),
                      (1, 2, 3, 0, 4)).reshape(bsz, 7, 7, 3 * c)      # (B,7,7,3072)

    hh = conv_op(x, p['conv1_fusion'])                      # norm5 folded; bn1+ReLU post
    d = conv_op(x, p['down_conv'], out_dtype=jnp.float32)   # norm5 folded; down-bn post
    hh = conv_op(hh, p['conv2_fusion'], residual=d)         # bn2 + residual add + ReLU
    hh = conv_op(hh, p['conv_fusion'])                      # 1x1 + ReLU fused

    # PyTorch flattens NCHW: (N, C, H, W) -> (N, C*H*W)
    n, hgt, wid, cf = hh.shape
    flat = jnp.transpose(hh, (0, 3, 1, 2)).reshape(n, cf * hgt * wid)

    # classifier (Dropout = identity, inference semantics)
    y = fused_matmul(flat, p['fc1'])                        # bias+ReLU fused epilogue
    y = fused_matmul(y, p['fc2'])
    y = fused_matmul(y, p['fc3'], out_dtype=jnp.float32)
    return y


# ----------------------------------------------------------------- main
if __name__ == "__main__":
    key = jax.random.PRNGKey(0)
    k1, k2, k3 = jax.random.split(key, 3)
    B = 1
    # Spatial size must be 224 so the 7x7 fused feature map matches the
    # module's Linear(64*7*7, 512); batch kept small (1).
    x1 = jax.random.normal(k1, (B, 3, 224, 224), jnp.float32)
    x2 = jax.random.normal(k2, (B, 1, 224, 224), jnp.float32)
    x3 = jax.random.normal(k3, (B, 1, 224, 224), jnp.float32)

    params = init_model(num_classes=6)
    out = densenet121_fusion_forward(x1, x2, x3, params)
    out = jax.block_until_ready(out)
    assert out.shape == (B, 6)
    print("KERNEL_OK")
</pallas_src>

<mosaic_0001>
module attributes {stable_mosaic.version = 11 : i64} {
  func.func @_mm_kernel(%arg0: i32, %arg1: i32, %arg2: memref<512x256xbf16, #tpu.memory_space<vmem>>, %arg3: memref<256x128xbf16, #tpu.memory_space<vmem>>, %arg4: memref<1x128xf32, #tpu.memory_space<vmem>>, %arg5: memref<1x128xf32, #tpu.memory_space<vmem>>, %arg6: memref<512x128xbf16, #tpu.memory_space<vmem>>) attributes {dimension_semantics = [#tpu.dimension_semantics<parallel>, #tpu.dimension_semantics<parallel>], iteration_bounds = array<i64: 25, 1>, scalar_prefetch = 0 : i64, scratch_operands = 0 : i64, tpu.core_type = #tpu.core_type<tc>, window_params = [{transform_indices = @transform_0, window_bounds = array<i64: 512, 256>}, {transform_indices = @transform_1, window_bounds = array<i64: 256, 128>}, {transform_indices = @transform_2, window_bounds = array<i64: 1, 128>}, {transform_indices = @transform_3, window_bounds = array<i64: 1, 128>}, {transform_indices = @transform_4, window_bounds = array<i64: 512, 128>}]} {
    %c0 = arith.constant 0 : index
    %c0_0 = arith.constant 0 : index
    %0 = vector.load %arg2[%c0, %c0_0] : memref<512x256xbf16, #tpu.memory_space<vmem>>, vector<512x256xbf16>
    %c0_1 = arith.constant 0 : index
    %c0_2 = arith.constant 0 : index
    %1 = vector.load %arg3[%c0_1, %c0_2] : memref<256x128xbf16, #tpu.memory_space<vmem>>, vector<256x128xbf16>
    %cst = arith.constant dense<0.000000e+00> : vector<512x128xf32>
    %2 = tpu.matmul %0, %1, %cst {dimension_numbers = #tpu.dot_dimension_numbers<[1], [0], [0], [1], [0, 0, 1, 1], [], []>} : vector<512x256xbf16>, vector<256x128xbf16>, vector<512x128xf32> -> vector<512x128xf32>
    %c0_3 = arith.constant 0 : index
    %c0_4 = arith.constant 0 : index
    %3 = vector.load %arg4[%c0_3, %c0_4] : memref<1x128xf32, #tpu.memory_space<vmem>>, vector<1x128xf32>
    %4 = vector.broadcast %3 : vector<1x128xf32> to vector<512x128xf32>
    %5 = arith.mulf %2, %4 : vector<512x128xf32>
    %c0_5 = arith.constant 0 : index
    %c0_6 = arith.constant 0 : index
    %6 = vector.load %arg5[%c0_5, %c0_6] : memref<1x128xf32, #tpu.memory_space<vmem>>, vector<1x128xf32>
    %7 = vector.broadcast %6 : vector<1x128xf32> to vector<512x128xf32>
    %8 = arith.addf %5, %7 : vector<512x128xf32>
    %cst_7 = arith.constant 0.000000e+00 : f32
    %9 = vector.broadcast %cst_7 : f32 to vector<512x128xf32>
    %10 = arith.maximumf %8, %9 : vector<512x128xf32>
    %11 = arith.truncf %10 : vector<512x128xf32> to vector<512x128xbf16>
    %c0_8 = arith.constant 0 : index
    %c0_9 = arith.constant 0 : index
    %12 = vector.load %arg6[%c0_8, %c0_9] : memref<512x128xbf16, #tpu.memory_space<vmem>>, vector<512x128xbf16>
    tpu.vector_store %arg6[%c0_8, %c0_9], %11 {strides = array<i32>} : memref<512x128xbf16, #tpu.memory_space<vmem>>, vector<512x128xbf16>,
    return
  }
  func.func @transform_0(%arg0: i32, %arg1: i32) -> (i32, i32) {
    %c0_i32 = arith.constant 0 : i32
    %c0_i32_0 = arith.constant 0 : i32
    return %arg0, %c0_i32 : i32, i32
  }
  func.func @transform_1(%arg0: i32, %arg1: i32) -> (i32, i32) {
    %c0_i32 = arith.constant 0 : i32
    %c0_i32_0 = arith.constant 0 : i32
    return %c0_i32, %arg1 : i32, i32
  }
  func.func @transform_2(%arg0: i32, %arg1: i32) -> (i32, i32) {
    %c0_i32 = arith.constant 0 : i32
    %c0_i32_0 = arith.constant 0 : i32
    return %c0_i32, %arg1 : i32, i32
  }
  func.func @transform_3(%arg0: i32, %arg1: i32) -> (i32, i32) {
    %c0_i32 = arith.constant 0 : i32
    %c0_i32_0 = arith.constant 0 : i32
    return %c0_i32, %arg1 : i32, i32
  }
  func.func @transform_4(%arg0: i32, %arg1: i32) -> (i32, i32) {
    %c0_i32 = arith.constant 0 : i32
    return %arg0, %arg1 : i32, i32
  }
}

</mosaic_0001>

<llo_original>
// kernel: tpu_custom_call.1
$region0: #{tpu_custom_call.1}
  #allocation0 [shape = 'u32[]', space=smem, size = 0x4, offset = 0x4, fixed_abs, tag = 'smem constant byte address 0x4 - core index']
  #allocation1 [shape = 'u32[144,128]{1,0:T(1,128)}', space=vmem, size = 0x12000, scoped, tag = 'internal scratch']
  %s0 = inlined_call_operand.hbm [shape: bf16[12800,256], index: 0, kind: input, shape index: {}]
  %s1 = inlined_call_operand.hbm [shape: bf16[256,128], index: 1, kind: input, shape index: {}]
  %s2 = inlined_call_operand.hbm [shape: f32[1,128], index: 2, kind: input, shape index: {}]
  %s3 = inlined_call_operand.hbm [shape: f32[1,128], index: 3, kind: input, shape index: {}]
  %s4 = inlined_call_operand.hbm [shape: bf16[12800,128], index: 4, kind: output, shape index: {}]
  %s5 = sld [smem:[#allocation0]]
  $region65: #{tpu_custom_call.1} parent=0
    _
  %s7 = ssub.s32 1, %s5
  %s8 = scalar_select 0, %s7, %s5
  $region1: #{tpu_custom_call.1} parent=0
    #allocation2 [shape = 'u8[524288]{0}', space=vmem, size = 0x80000, scoped, tag = 'input window, operand 0']
    #allocation3 [shape = 's32[2]{0}', space=sflag, size = 0x8, scoped, tag = 'scoped memory for tpu_custom_call.1']
    #allocation4 [shape = 's32[2]{0}', space=sflag, size = 0x8, scoped, tag = 'scoped memory for tpu_custom_call.1']
    #allocation5 [shape = 'u8[65536]{0}', space=vmem, size = 0x10000, scoped, tag = 'input window, operand 1, single buffered']
    #allocation6 [shape = 's32[1]{0}', space=sflag, size = 0x4, scoped, tag = 'scoped memory for tpu_custom_call.1']
    #allocation7 [shape = 'u8[512]{0}', space=vmem, size = 0x400, scoped, tag = 'input window, operand 2, single buffered']
    #allocation8 [shape = 'u8[512]{0}', space=vmem, size = 0x400, scoped, tag = 'input window, operand 3, single buffered']
    #allocation9 [shape = 's32[1]{0}', space=sflag, size = 0x4, scoped, tag = 'scoped memory for tpu_custom_call.1']
    #allocation10 [shape = 'u8[262144]{0}', space=vmem, size = 0x40000, scoped, tag = 'output window, operand 0']
    %9 = vsyncpa [#allocation3], 0
    %s10 = scalar_lea.sflag [#allocation3], 1
    %11 = vsyncpa %s10, 0
    %12 = vsyncpa [#allocation6], 0
    %13 = vsyncpa [#allocation9], 0
    %14 = vsyncpa [#allocation4], 0
    %s15 = scalar_lea.sflag [#allocation4], 1
    %16 = vsyncpa %s15, 0
    loop: start=0, step=1, limit=27
    $region2: #{tpu_custom_call.1} parent=1 // loop_pre_header
      _
    $region3: #{tpu_custom_call.1} parent=1 // loop_header
      %s18 = sphi 0, %s22
      %p19 = scmp.ge.s32.totalorder %s18, 27
      %s25 = sphi 0, %s37
      %s26 = sphi 0, %s33
      %s27 = sphi 0, %s25
      %s28 = sphi 0, %s26
      %s29 = sphi 0, %s27
      %s30 = sphi 0, %s28
      %s40 = sphi 0, %s42
      %s43 = sphi 0, %s40
      %s44 = sphi 0, %s43
      %s60 = sphi 0, %s44
      %s66 = sphi 0, %s68
      %s69 = sphi 0, %s66
      %s70 = sphi 0, %s69
      %s86 = sphi 0, %s70
      %s92 = sphi 0, %s94
      %s95 = sphi 0, %s92
      %s96 = sphi 0, %s95
      %s112 = sphi 0, %s96
      %s118 = sphi 0, %s120
      %s121 = sphi 0, %s118
      %s122 = sphi 0, %s121
      %s138 = sphi 0, %s122
      %s146 = sphi 0, %s148
      %s149 = sphi 0, %s146
      %s150 = sphi 0, %s149
      %s166 = sphi 0, %s150
    $region4: #{tpu_custom_call.1} parent=1 // loop_header_branch
      %21 = sbr.rel (%p19) target = $region8
    $region5: #{tpu_custom_call.1} parent=1 // loop_body
      %s23 = ssub.s32 %s18, 1
      %s24 = ssub.s32 %s18, 2
      %s31 = sadd.s32 1, %s26
      %p32 = scmp.ge.s32.totalorder %s31, 1
      %s33 = scalar_select %p32, 0, %s31
      %s34 = sadd.s32 1, %s25
      %s35 = scalar_select %p32, %s34, %s25
      %p36 = scmp.ge.s32.totalorder %s35, 25
      %s37 = scalar_select %p36, 0, %s35
      %s38 = ssub.s32 %s25, %s37
      %p39 = scmp.eq.s32.totalorder %s38, 0
      %s41 = sadd.s32 %s40, 1
      %s42 = scalar_select %p39, %s40, %s41
      %p45 = pneg %p39
      %p46 = scmp.eq.s32.totalorder %s18, 24
      %p47 = por %p45, %p46
      %p48 = scmp.ne.s32.totalorder %s40, %s43
      %p49 = scmp.eq.s32.totalorder %s18, 0
      %p50 = por %p48, %p49
      %p51 = scmp.ne.s32.totalorder %s40, %s43
      %p52 = scmp.eq.s32.totalorder %s23, 24
      %p53 = por %p51, %p52
      %p54 = scmp.ne.s32.totalorder %s43, %s44
      %p55 = scmp.eq.s32.totalorder %s23, 0
      %p56 = por %p54, %p55
      %p57 = scmp.ne.s32.totalorder %s43, %s44
      %p58 = scmp.eq.s32.totalorder %s24, 24
      %p59 = por %p57, %p58
      %p61 = scmp.ne.s32.totalorder %s44, %s60
      %p62 = scmp.eq.s32.totalorder %s24, 0
      %p63 = por %p61, %p62
      %s64 = ssub.s32 %s26, %s33
      %p65 = scmp.eq.s32.totalorder %s64, 0
      %s67 = sadd.s32 %s66, 1
      %s68 = scalar_select %p65, %s66, %s67
      %p71 = pneg %p65
      %p72 = scmp.eq.s32.totalorder %s18, 24
      %p73 = por %p71, %p72
      %p74 = scmp.ne.s32.totalorder %s66, %s69
      %p75 = scmp.eq.s32.totalorder %s18, 0
      %p76 = por %p74, %p75
      %p77 = scmp.ne.s32.totalorder %s66, %s69
      %p78 = scmp.eq.s32.totalorder %s23, 24
      %p79 = por %p77, %p78
      %p80 = scmp.ne.s32.totalorder %s69, %s70
      %p81 = scmp.eq.s32.totalorder %s23, 0
      %p82 = por %p80, %p81
      %p83 = scmp.ne.s32.totalorder %s69, %s70
      %p84 = scmp.eq.s32.totalorder %s24, 24
      %p85 = por %p83, %p84
      %p87 = scmp.ne.s32.totalorder %s70, %s86
      %p88 = scmp.eq.s32.totalorder %s24, 0
      %p89 = por %p87, %p88
      %s90 = ssub.s32 %s26, %s33
      %p91 = scmp.eq.s32.totalorder %s90, 0
      %s93 = sadd.s32 %s92, 1
      %s94 = scalar_select %p91, %s92, %s93
      %p97 = pneg %p91
      %p98 = scmp.eq.s32.totalorder %s18, 24
      %p99 = por %p97, %p98
      %p100 = scmp.ne.s32.totalorder %s92, %s95
      %p101 = scmp.eq.s32.totalorder %s18, 0
      %p102 = por %p100, %p101
      %p103 = scmp.ne.s32.totalorder %s92, %s95
      %p104 = scmp.eq.s32.totalorder %s23, 24
      %p105 = por %p103, %p104
      %p106 = scmp.ne.s32.totalorder %s95, %s96
      %p107 = scmp.eq.s32.totalorder %s23, 0
      %p108 = por %p106, %p107
      %p109 = scmp.ne.s32.totalorder %s95, %s96
      %p110 = scmp.eq.s32.totalorder %s24, 24
      %p111 = por %p109, %p110
      %p113 = scmp.ne.s32.totalorder %s96, %s112
      %p114 = scmp.eq.s32.totalorder %s24, 0
      %p115 = por %p113, %p114
      %s116 = ssub.s32 %s26, %s33
      %p117 = scmp.eq.s32.totalorder %s116, 0
      %s119 = sadd.s32 %s118, 1
      %s120 = scalar_select %p117, %s118, %s119
      %p123 = pneg %p117
      %p124 = scmp.eq.s32.totalorder %s18, 24
      %p125 = por %p123, %p124
      %p126 = scmp.ne.s32.totalorder %s118, %s121
      %p127 = scmp.eq.s32.totalorder %s18, 0
      %p128 = por %p126, %p127
      %p129 = scmp.ne.s32.totalorder %s118, %s121
      %p130 = scmp.eq.s32.totalorder %s23, 24
      %p131 = por %p129, %p130
      %p132 = scmp.ne.s32.totalorder %s121, %s122
      %p133 = scmp.eq.s32.totalorder %s23, 0
      %p134 = por %p132, %p133
      %p135 = scmp.ne.s32.totalorder %s121, %s122
      %p136 = scmp.eq.s32.totalorder %s24, 24
      %p137 = por %p135, %p136
      %p139 = scmp.ne.s32.totalorder %s122, %s138
      %p140 = scmp.eq.s32.totalorder %s24, 0
      %p141 = por %p139, %p140
      %s142 = ssub.s32 %s25, %s37
      %s143 = ssub.s32 %s26, %s33
      %s144 = sor.u32 %s142, %s143
      %p145 = scmp.eq.s32.totalorder %s144, 0
      %s147 = sadd.s32 %s146, 1
      %s148 = scalar_select %p145, %s146, %s147
      %p151 = pneg %p145
      %p152 = scmp.eq.s32.totalorder %s18, 24
      %p153 = por %p151, %p152
      %p154 = scmp.ne.s32.totalorder %s146, %s149
      %p155 = scmp.eq.s32.totalorder %s18, 0
      %p156 = por %p154, %p155
      %p157 = scmp.ne.s32.totalorder %s146, %s149
      %p158 = scmp.eq.s32.totalorder %s23, 24
      %p159 = por %p157, %p158
      %p160 = scmp.ne.s32.totalorder %s149, %s150
      %p161 = scmp.eq.s32.totalorder %s23, 0
      %p162 = por %p160, %p161
      %p163 = scmp.ne.s32.totalorder %s149, %s150
      %p164 = scmp.eq.s32.totalorder %s24, 24
      %p165 = por %p163, %p164
      %p167 = scmp.ne.s32.totalorder %s150, %s166
      %p168 = scmp.eq.s32.totalorder %s24, 0
      %p169 = por %p167, %p168
      %p170 = scmp.le.s32.totalorder 1, %s18
      %p171 = scmp.lt.s32.totalorder %s18, 26
      %p172 = pnand %p170, %p171
      %p173 = pneg %p172
      // Predicated region
      $region9: #{tpu_custom_call.1} parent=5 // pred_check
        _
      $region10: #{tpu_custom_call.1} parent=5 // pred_check_branch
        %175 = sbr.rel (%p172) target = $region12
      $region11: #{tpu_custom_call.1} parent=5 // pred_region
        %s176 = ssub.s32 %s18, 1
        // Predicated region
        $region13: #{tpu_custom_call.1} parent=11 // pred_check
          %p177 = pneg %p82
        $region14: #{tpu_custom_call.1} parent=11 // pred_check_branch
          %179 = sbr.rel (%p177) target = $region16
        $region15: #{tpu_custom_call.1} parent=11 // pred_region
          %s181 = ssub.s32 2048, 2048
          %182 = vsyncadd [#allocation6], %s181
          %s183 = smul.addr %s28, 64
          %s184 = scalar_lea.hbm %s1, %s183
          %s185 = sshll.u32 [#allocation5], 4
          %s186 = int_to_ptr.vmem [resolvable:$true] %s185
          %191 = dma.hbm_to_vmem [thread:$0]  %s184, 2048, %s186, [#allocation6], 64, 64, 4
        $region16: #{tpu_custom_call.1} parent=11 // pred_fallthru
          _
        // Predicated region
        $region17: #{tpu_custom_call.1} parent=11 // pred_check
          %p192 = pneg %p108
        $region18: #{tpu_custom_call.1} parent=11 // pred_check_branch
          %194 = sbr.rel (%p192) target = $region20
        $region19: #{tpu_custom_call.1} parent=11 // pred_region
          %s196 = ssub.s32 16, 16
          %197 = vsyncadd [#allocation6], %s196
          %s198 = smul.addr %s28, 16
          %s199 = scalar_lea.hbm %s2, %s198
          %s201 = sshll.u32 [#allocation7], 4
          %s202 = int_to_ptr.vmem [resolvable:$true] %s201
          %204 = dma.hbm_to_vmem [thread:$0]  %s199, 16, %s202, [#allocation6]
        $region20: #{tpu_custom_call.1} parent=11 // pred_fallthru
          _
        // Predicated region
        $region21: #{tpu_custom_call.1} parent=11 // pred_check
          %p205 = pneg %p134
        $region22: #{tpu_custom_call.1} parent=11 // pred_check_branch
          %207 = sbr.rel (%p205) target = $region24
        $region23: #{tpu_custom_call.1} parent=11 // pred_region
          %s209 = ssub.s32 16, 16
          %210 = vsyncadd [#allocation9], %s209
          %s211 = smul.addr %s28, 16
          %s212 = scalar_lea.hbm %s3, %s211
          %s214 = sshll.u32 [#allocation8], 4
          %s215 = int_to_ptr.vmem [resolvable:$true] %s214
          %217 = dma.hbm_to_vmem [thread:$0]  %s212, 16, %s215, [#allocation9]
        $region24: #{tpu_custom_call.1} parent=11 // pred_fallthru
          _
      $region12: #{tpu_custom_call.1} parent=5 // pred_fallthru
        _
      %p218 = scmp.lt.s32.totalorder %s18, 25
      // Predicated region
      $region25: #{tpu_custom_call.1} parent=5 // pred_check
        %p219 = pneg %p218
      $region26: #{tpu_custom_call.1} parent=5 // pred_check_branch
        %221 = sbr.rel (%p219) target = $region28
      $region27: #{tpu_custom_call.1} parent=5 // pred_region
        // Predicated region
        $region29: #{tpu_custom_call.1} parent=27 // pred_check
          %p222 = pneg %p50
        $region30: #{tpu_custom_call.1} parent=27 // pred_check_branch
          %224 = sbr.rel (%p222) target = $region32
        $region31: #{tpu_custom_call.1} parent=27 // pred_region
          %s225 = sand.u32 %s40, 1
          %s226 = scalar_lea.sflag [#allocation3], %s225
          %s227 = sand.u32 %s40, 1
          %s228 = smul.addr %s227, 512
          %s229 = scalar_lea.vmem [#allocation2], %s228
          %s230 = smul.u32 64, %s25
          %s232 = ssub.s32 8192, 8192
          %233 = vsyncadd %s226, %s232
          %s234 = smul.addr %s230, 2
          %s235 = smul.addr %s234, 64
          %s236 = scalar_lea.hbm %s0, %s235
          %s237 = sshll.u32 %s229, 4
          %s238 = int_to_ptr.vmem [resolvable:$true] %s237
          %243 = dma.hbm_to_vmem [thread:$0]  %s236, 8192, %s238, %s226, 128, 128, 8
        $region32: #{tpu_custom_call.1} parent=27 // pred_fallthru
          _
      $region28: #{tpu_custom_call.1} parent=5 // pred_fallthru
        _
      %p244 = scmp.le.s32.totalorder 1, %s18
      %p245 = scmp.lt.s32.totalorder %s18, 26
      %p246 = pnand %p244, %p245
      %p247 = pneg %p246
      // Predicated region
      $region33: #{tpu_custom_call.1} parent=5 // pred_check
        _
      $region34: #{tpu_custom_call.1} parent=5 // pred_check_branch
        %249 = sbr.rel (%p246) target = $region36
      $region35: #{tpu_custom_call.1} parent=5 // pred_region
        %s250 = ssub.s32 %s18, 1
        %s251 = sand.u32 %s43, 1
        %s252 = scalar_lea.sflag [#allocation3], %s251
        %s253 = sand.u32 %s43, 1
        %s254 = smul.addr %s253, 512
        %s255 = scalar_lea.vmem [#allocation2], %s254
        // Predicated region
        $region37: #{tpu_custom_call.1} parent=35 // pred_check
          %p256 = pneg %p56
        $region38: #{tpu_custom_call.1} parent=35 // pred_check_branch
          %258 = sbr.rel (%p256) target = $region40
        $region39: #{tpu_custom_call.1} parent=35 // pred_region
          %259 = dma.done %s252, 8192
        $region40: #{tpu_custom_call.1} parent=35 // pred_fallthru
          _
        // Predicated region
        $region41: #{tpu_custom_call.1} parent=35 // pred_check
          %p260 = pneg %p82
        $region42: #{tpu_custom_call.1} parent=35 // pred_check_branch
          %262 = sbr.rel (%p260) target = $region44
        $region43: #{tpu_custom_call.1} parent=35 // pred_region
          %263 = dma.done [#allocation6], 2048
        $region44: #{tpu_custom_call.1} parent=35 // pred_fallthru
          _
        // Predicated region
        $region45: #{tpu_custom_call.1} parent=35 // pred_check
          %p264 = pneg %p108
        $region46: #{tpu_custom_call.1} parent=35 // pred_check_branch
          %266 = sbr.rel (%p264) target = $region48
        $region47: #{tpu_custom_call.1} parent=35 // pred_region
          %267 = dma.done [#allocation6], 16
        $region48: #{tpu_custom_call.1} parent=35 // pred_fallthru
          _
        // Predicated region
        $region49: #{tpu_custom_call.1} parent=35 // pred_check
          %p268 = pneg %p134
        $region50: #{tpu_custom_call.1} parent=35 // pred_check_branch
          %270 = sbr.rel (%p268) target = $region52
        $region51: #{tpu_custom_call.1} parent=35 // pred_region
          %271 = dma.done [#allocation9], 16
        $region52: #{tpu_custom_call.1} parent=35 // pred_fallthru
          _
        %s272 = sand.u32 %s43, 1
        %s273 = scalar_lea.sflag [#allocation3], %s272
        %s274 = sand.u32 %s43, 1
        %s275 = smul.addr %s274, 512
        %s276 = scalar_lea.vmem [#allocation2], %s275
        %p277 = pneg %p56
        %p278 = pneg %p53
        %p279 = pneg %p82
        %p280 = pneg %p79
        %p281 = pneg %p108
        %p282 = pneg %p105
        %p283 = pneg %p134
        %p284 = pneg %p131
        %p285 = pneg %p162
        %p286 = pneg %p159
        %s287 = sand.u32 %s149, 1
        %s288 = scalar_lea.sflag [#allocation4], %s287
        %s289 = sand.u32 %s149, 1
        %s290 = smul.addr %s289, 256
        %s291 = scalar_lea.vmem [#allocation10], %s290
        %s292 = smul.u32 64, %s27
        %s293 = smul.u32 64, %s27
        %v295 = vld [vmem:[%s255] sm:$0xff]
        %v296 = vld [vmem:[%s255 + $0x8] sm:$0xff]
        %v297 = vld [vmem:[%s255 + $0x10] sm:$0xff]
        %v298 = vld [vmem:[%s255 + $0x18] sm:$0xff]
        %v299 = vld [vmem:[%s255 + $0x20] sm:$0xff]
        %v300 = vld [vmem:[%s255 + $0x28] sm:$0xff]
        %v301 = vld [vmem:[%s255 + $0x30] sm:$0xff]
        %v302 = vld [vmem:[%s255 + $0x38] sm:$0xff]
        %v303 = vld [vmem:[%s255 + $0x40] sm:$0xff]
        %v304 = vld [vmem:[%s255 + $0x48] sm:$0xff]
        %v305 = vld [vmem:[%s255 + $0x50] sm:$0xff]
        %v306 = vld [vmem:[%s255 + $0x58] sm:$0xff]
        %v307 = vld [vmem:[%s255 + $0x60] sm:$0xff]
        %v308 = vld [vmem:[%s255 + $0x68] sm:$0xff]
        %v309 = vld [vmem:[%s255 + $0x70] sm:$0xff]
        %v310 = vld [vmem:[%s255 + $0x78] sm:$0xff]
        %v311 = vld [vmem:[%s255 + $0x80] sm:$0xff]
        %v312 = vld [vmem:[%s255 + $0x88] sm:$0xff]
        %v313 = vld [vmem:[%s255 + $0x90] sm:$0xff]
        %v314 = vld [vmem:[%s255 + $0x98] sm:$0xff]
        %v315 = vld [vmem:[%s255 + $0xa0] sm:$0xff]
        %v316 = vld [vmem:[%s255 + $0xa8] sm:$0xff]
        %v317 = vld [vmem:[%s255 + $0xb0] sm:$0xff]
        %v318 = vld [vmem:[%s255 + $0xb8] sm:$0xff]
        %v319 = vld [vmem:[%s255 + $0xc0] sm:$0xff]
        %v320 = vld [vmem:[%s255 + $0xc8] sm:$0xff]
        %v321 = vld [vmem:[%s255 + $0xd0] sm:$0xff]
        %v322 = vld [vmem:[%s255 + $0xd8] sm:$0xff]
        %v323 = vld [vmem:[%s255 + $0xe0] sm:$0xff]
        %v324 = vld [vmem:[%s255 + $0xe8] sm:$0xff]
        %v325 = vld [vmem:[%s255 + $0xf0] sm:$0xff]
        %v326 = vld [vmem:[%s255 + $0xf8] sm:$0xff]
        %v327 = vld [vmem:[%s255 + $0x100] sm:$0xff]
        %v328 = vld [vmem:[%s255 + $0x108] sm:$0xff]
        %v329 = vld [vmem:[%s255 + $0x110] sm:$0xff]
        %v330 = vld [vmem:[%s255 + $0x118] sm:$0xff]
        %v331 = vld [vmem:[%s255 + $0x120] sm:$0xff]
        %v332 = vld [vmem:[%s255 + $0x128] sm:$0xff]
        %v333 = vld [vmem:[%s255 + $0x130] sm:$0xff]
        %v334 = vld [vmem:[%s255 + $0x138] sm:$0xff]
        %v335 = vld [vmem:[%s255 + $0x140] sm:$0xff]
        %v336 = vld [vmem:[%s255 + $0x148] sm:$0xff]
        %v337 = vld [vmem:[%s255 + $0x150] sm:$0xff]
        %v338 = vld [vmem:[%s255 + $0x158] sm:$0xff]
        %v339 = vld [vmem:[%s255 + $0x160] sm:$0xff]
        %v340 = vld [vmem:[%s255 + $0x168] sm:$0xff]
        %v341 = vld [vmem:[%s255 + $0x170] sm:$0xff]
        %v342 = vld [vmem:[%s255 + $0x178] sm:$0xff]
        %v343 = vld [vmem:[%s255 + $0x180] sm:$0xff]
        %v344 = vld [vmem:[%s255 + $0x188] sm:$0xff]
        %v345 = vld [vmem:[%s255 + $0x190] sm:$0xff]
        %v346 = vld [vmem:[%s255 + $0x198] sm:$0xff]
        %v347 = vld [vmem:[%s255 + $0x1a0] sm:$0xff]
        %v348 = vld [vmem:[%s255 + $0x1a8] sm:$0xff]
        %v349 = vld [vmem:[%s255 + $0x1b0] sm:$0xff]
        %v350 = vld [vmem:[%s255 + $0x1b8] sm:$0xff]
        %v351 = vld [vmem:[%s255 + $0x1c0] sm:$0xff]
        %v352 = vld [vmem:[%s255 + $0x1c8] sm:$0xff]
        %v353 = vld [vmem:[%s255 + $0x1d0] sm:$0xff]
        %v354 = vld [vmem:[%s255 + $0x1d8] sm:$0xff]
        %v355 = vld [vmem:[%s255 + $0x1e0] sm:$0xff]
        %v356 = vld [vmem:[%s255 + $0x1e8] sm:$0xff]
        %v357 = vld [vmem:[%s255 + $0x1f0] sm:$0xff]
        %v358 = vld [vmem:[%s255 + $0x1f8] sm:$0xff]
        %v359 = vld [vmem:[#allocation5] sm:$0xf]
        %v360 = vld [vmem:[#allocation5 + $0x4] sm:$0xf]
        %v361 = vld [vmem:[#allocation5 + $0x8] sm:$0xf]
        %v362 = vld [vmem:[#allocation5 + $0xc] sm:$0xf]
        %v363 = vld [vmem:[#allocation5 + $0x10] sm:$0xf]
        %v364 = vld [vmem:[#allocation5 + $0x14] sm:$0xf]
        %v365 = vld [vmem:[#allocation5 + $0x18] sm:$0xf]
        %v366 = vld [vmem:[#allocation5 + $0x1c] sm:$0xf]
        %v367 = vld [vmem:[#allocation5 + $0x20] sm:$0xf]
        %v368 = vld [vmem:[#allocation5 + $0x24] sm:$0xf]
        %v369 = vld [vmem:[#allocation5 + $0x28] sm:$0xf]
        %v370 = vld [vmem:[#allocation5 + $0x2c] sm:$0xf]
        %v371 = vld [vmem:[#allocation5 + $0x30] sm:$0xf]
        %v372 = vld [vmem:[#allocation5 + $0x34] sm:$0xf]
        %v373 = vld [vmem:[#allocation5 + $0x38] sm:$0xf]
        %v374 = vld [vmem:[#allocation5 + $0x3c] sm:$0xf]
        %v375 = vld [vmem:[#allocation5 + $0x40] sm:$0xf]
        %v376 = vld [vmem:[#allocation5 + $0x44] sm:$0xf]
        %v377 = vld [vmem:[#allocation5 + $0x48] sm:$0xf]
        %v378 = vld [vmem:[#allocation5 + $0x4c] sm:$0xf]
        %v379 = vld [vmem:[#allocation5 + $0x50] sm:$0xf]
        %v380 = vld [vmem:[#allocation5 + $0x54] sm:$0xf]
        %v381 = vld [vmem:[#allocation5 + $0x58] sm:$0xf]
        %v382 = vld [vmem:[#allocation5 + $0x5c] sm:$0xf]
        %v383 = vld [vmem:[#allocation5 + $0x60] sm:$0xf]
        %v384 = vld [vmem:[#allocation5 + $0x64] sm:$0xf]
        %v385 = vld [vmem:[#allocation5 + $0x68] sm:$0xf]
        %v386 = vld [vmem:[#allocation5 + $0x6c] sm:$0xf]
        %v387 = vld [vmem:[#allocation5 + $0x70] sm:$0xf]
        %v388 = vld [vmem:[#allocation5 + $0x74] sm:$0xf]
        %v389 = vld [vmem:[#allocation5 + $0x78] sm:$0xf]
        %v390 = vld [vmem:[#allocation5 + $0x7c] sm:$0xf]
        %v455 = vunpack.c.l.b16 %v295
        %v456 = vunpack.c.h.b16 %v295
        %v457 = vunpack.c.l.b16 %v296
        %v458 = vunpack.c.h.b16 %v296
        %v459 = vunpack.c.l.b16 %v297
        %v460 = vunpack.c.h.b16 %v297
        %v461 = vunpack.c.l.b16 %v298
        %v462 = vunpack.c.h.b16 %v298
        %v463 = vunpack.c.l.b16 %v299
        %v464 = vunpack.c.h.b16 %v299
        %v465 = vunpack.c.l.b16 %v300
        %v466 = vunpack.c.h.b16 %v300
        %v467 = vunpack.c.l.b16 %v301
        %v468 = vunpack.c.h.b16 %v301
        %v469 = vunpack.c.l.b16 %v302
        %v470 = vunpack.c.h.b16 %v302
        %v471 = vunpack.c.l.b16 %v303
        %v472 = vunpack.c.h.b16 %v303
        %v473 = vunpack.c.l.b16 %v304
        %v474 = vunpack.c.h.b16 %v304
        %v475 = vunpack.c.l.b16 %v305
        %v476 = vunpack.c.h.b16 %v305
        %v477 = vunpack.c.l.b16 %v306
        %v478 = vunpack.c.h.b16 %v306
        %v479 = vunpack.c.l.b16 %v307
        %v480 = vunpack.c.h.b16 %v307
        %v481 = vunpack.c.l.b16 %v308
        %v482 = vunpack.c.h.b16 %v308
        %v483 = vunpack.c.l.b16 %v309
        %v484 = vunpack.c.h.b16 %v309
        %v485 = vunpack.c.l.b16 %v310
        %v486 = vunpack.c.h.b16 %v310
        %v487 = vunpack.c.l.b16 %v311
        %v488 = vunpack.c.h.b16 %v311
        %v489 = vunpack.c.l.b16 %v312
        %v490 = vunpack.c.h.b16 %v312
        %v491 = vunpack.c.l.b16 %v313
        %v492 = vunpack.c.h.b16 %v313
        %v493 = vunpack.c.l.b16 %v314
        %v494 = vunpack.c.h.b16 %v314
        %v495 = vunpack.c.l.b16 %v315
        %v496 = vunpack.c.h.b16 %v315
        %v497 = vunpack.c.l.b16 %v316
        %v498 = vunpack.c.h.b16 %v316
        %v499 = vunpack.c.l.b16 %v317
        %v500 = vunpack.c.h.b16 %v317
        %v501 = vunpack.c.l.b16 %v318
        %v502 = vunpack.c.h.b16 %v318
        %v503 = vunpack.c.l.b16 %v319
        %v504 = vunpack.c.h.b16 %v319
        %v505 = vunpack.c.l.b16 %v320
        %v506 = vunpack.c.h.b16 %v320
        %v507 = vunpack.c.l.b16 %v321
        %v508 = vunpack.c.h.b16 %v321
        %v509 = vunpack.c.l.b16 %v322
        %v510 = vunpack.c.h.b16 %v322
        %v511 = vunpack.c.l.b16 %v323
        %v512 = vunpack.c.h.b16 %v323
        %v513 = vunpack.c.l.b16 %v324
        %v514 = vunpack.c.h.b16 %v324
        %v515 = vunpack.c.l.b16 %v325
        %v516 = vunpack.c.h.b16 %v325
        %v517 = vunpack.c.l.b16 %v326
        %v518 = vunpack.c.h.b16 %v326
        %v519 = vunpack.c.l.b16 %v327
        %v520 = vunpack.c.h.b16 %v327
        %v521 = vunpack.c.l.b16 %v328
        %v522 = vunpack.c.h.b16 %v328
        %v523 = vunpack.c.l.b16 %v329
        %v524 = vunpack.c.h.b16 %v329
        %v525 = vunpack.c.l.b16 %v330
        %v526 = vunpack.c.h.b16 %v330
        %v527 = vunpack.c.l.b16 %v331
        %v528 = vunpack.c.h.b16 %v331
        %v529 = vunpack.c.l.b16 %v332
        %v530 = vunpack.c.h.b16 %v332
        %v531 = vunpack.c.l.b16 %v333
        %v532 = vunpack.c.h.b16 %v333
        %v533 = vunpack.c.l.b16 %v334
        %v534 = vunpack.c.h.b16 %v334
        %v535 = vunpack.c.l.b16 %v335
        %v536 = vunpack.c.h.b16 %v335
        %v537 = vunpack.c.l.b16 %v336
        %v538 = vunpack.c.h.b16 %v336
        %v539 = vunpack.c.l.b16 %v337
        %v540 = vunpack.c.h.b16 %v337
        %v541 = vunpack.c.l.b16 %v338
        %v542 = vunpack.c.h.b16 %v338
        %v543 = vunpack.c.l.b16 %v339
        %v544 = vunpack.c.h.b16 %v339
        %v545 = vunpack.c.l.b16 %v340
        %v546 = vunpack.c.h.b16 %v340
        %v547 = vunpack.c.l.b16 %v341
        %v548 = vunpack.c.h.b16 %v341
        %v549 = vunpack.c.l.b16 %v342
        %v550 = vunpack.c.h.b16 %v342
        %v551 = vunpack.c.l.b16 %v343
        %v552 = vunpack.c.h.b16 %v343
        %v553 = vunpack.c.l.b16 %v344
        %v554 = vunpack.c.h.b16 %v344
        %v555 = vunpack.c.l.b16 %v345
        %v556 = vunpack.c.h.b16 %v345
        %v557 = vunpack.c.l.b16 %v346
        %v558 = vunpack.c.h.b16 %v346
        %v559 = vunpack.c.l.b16 %v347
        %v560 = vunpack.c.h.b16 %v347
        %v561 = vunpack.c.l.b16 %v348
        %v562 = vunpack.c.h.b16 %v348
        %v563 = vunpack.c.l.b16 %v349
        %v564 = vunpack.c.h.b16 %v349
        %v565 = vunpack.c.l.b16 %v350
        %v566 = vunpack.c.h.b16 %v350
        %v567 = vunpack.c.l.b16 %v351
        %v568 = vunpack.c.h.b16 %v351
        %v569 = vunpack.c.l.b16 %v352
        %v570 = vunpack.c.h.b16 %v352
        %v571 = vunpack.c.l.b16 %v353
        %v572 = vunpack.c.h.b16 %v353
        %v573 = vunpack.c.l.b16 %v354
        %v574 = vunpack.c.h.b16 %v354
        %v575 = vunpack.c.l.b16 %v355
        %v576 = vunpack.c.h.b16 %v355
        %v577 = vunpack.c.l.b16 %v356
        %v578 = vunpack.c.h.b16 %v356
        %v579 = vunpack.c.l.b16 %v357
        %v580 = vunpack.c.h.b16 %v357
        %v581 = vunpack.c.l.b16 %v358
        %v582 = vunpack.c.h.b16 %v358
        %v583 = vpack.c.b16 %v457, %v455
        %v584 = vpack.c.b16 %v458, %v456
        %v585 = vpack.c.b16 %v461, %v459
        %v586 = vpack.c.b16 %v462, %v460
        %v587 = vpack.c.b16 %v465, %v463
        %v588 = vpack.c.b16 %v466, %v464
        %v589 = vpack.c.b16 %v469, %v467
        %v590 = vpack.c.b16 %v470, %v468
        %v591 = vpack.c.b16 %v473, %v471
        %v592 = vpack.c.b16 %v474, %v472
        %v593 = vpack.c.b16 %v477, %v475
        %v594 = vpack.c.b16 %v478, %v476
        %v595 = vpack.c.b16 %v481, %v479
        %v596 = vpack.c.b16 %v482, %v480
        %v597 = vpack.c.b16 %v485, %v483
        %v598 = vpack.c.b16 %v486, %v484
        %v599 = vpack.c.b16 %v489, %v487
        %v600 = vpack.c.b16 %v490, %v488
        %v601 = vpack.c.b16 %v493, %v491
        %v602 = vpack.c.b16 %v494, %v492
        %v603 = vpack.c.b16 %v497, %v495
        %v604 = vpack.c.b16 %v498, %v496
        %v605 = vpack.c.b16 %v501, %v499
        %v606 = vpack.c.b16 %v502, %v500
        %v607 = vpack.c.b16 %v505, %v503
        %v608 = vpack.c.b16 %v506, %v504
        %v609 = vpack.c.b16 %v509, %v507
        %v610 = vpack.c.b16 %v510, %v508
        %v611 = vpack.c.b16 %v513, %v511
        %v612 = vpack.c.b16 %v514, %v512
        %v613 = vpack.c.b16 %v517, %v515
        %v614 = vpack.c.b16 %v518, %v516
        %v615 = vpack.c.b16 %v521, %v519
        %v616 = vpack.c.b16 %v522, %v520
        %v617 = vpack.c.b16 %v525, %v523
        %v618 = vpack.c.b16 %v526, %v524
        %v619 = vpack.c.b16 %v529, %v527
        %v620 = vpack.c.b16 %v530, %v528
        %v621 = vpack.c.b16 %v533, %v531
        %v622 = vpack.c.b16 %v534, %v532
        %v623 = vpack.c.b16 %v537, %v535
        %v624 = vpack.c.b16 %v538, %v536
        %v625 = vpack.c.b16 %v541, %v539
        %v626 = vpack.c.b16 %v542, %v540
        %v627 = vpack.c.b16 %v545, %v543
        %v628 = vpack.c.b16 %v546, %v544
        %v629 = vpack.c.b16 %v549, %v547
        %v630 = vpack.c.b16 %v550, %v548
        %v631 = vpack.c.b16 %v553, %v551
        %v632 = vpack.c.b16 %v554, %v552
        %v633 = vpack.c.b16 %v557, %v555
        %v634 = vpack.c.b16 %v558, %v556
        %v635 = vpack.c.b16 %v561, %v559
        %v636 = vpack.c.b16 %v562, %v560
        %v637 = vpack.c.b16 %v565, %v563
        %v638 = vpack.c.b16 %v566, %v564
        %v639 = vpack.c.b16 %v569, %v567
        %v640 = vpack.c.b16 %v570, %v568
        %v641 = vpack.c.b16 %v573, %v571
        %v642 = vpack.c.b16 %v574, %v572
        %v643 = vpack.c.b16 %v577, %v575
        %v644 = vpack.c.b16 %v578, %v576
        %v645 = vpack.c.b16 %v581, %v579
        %v646 = vpack.c.b16 %v582, %v580
        %v743 = vunpack.c.l.b16 %v359
        %v744 = vunpack.c.l.b16 %v360
        %v745 = vunpack.c.l.b16 %v361
        %v746 = vunpack.c.l.b16 %v362
        %v747 = vunpack.c.l.b16 %v363
        %v748 = vunpack.c.l.b16 %v364
        %v749 = vunpack.c.l.b16 %v365
        %v750 = vunpack.c.l.b16 %v366
        %v751 = vunpack.c.l.b16 %v367
        %v752 = vunpack.c.l.b16 %v368
        %v753 = vunpack.c.l.b16 %v369
        %v754 = vunpack.c.l.b16 %v370
        %v755 = vunpack.c.l.b16 %v371
        %v756 = vunpack.c.l.b16 %v372
        %v757 = vunpack.c.l.b16 %v373
        %v758 = vunpack.c.l.b16 %v374
        %v759 = vunpack.c.l.b16 %v375
        %v760 = vunpack.c.l.b16 %v376
        %v761 = vunpack.c.l.b16 %v377
        %v762 = vunpack.c.l.b16 %v378
        %v763 = vunpack.c.l.b16 %v379
        %v764 = vunpack.c.l.b16 %v380
        %v765 = vunpack.c.l.b16 %v381
        %v766 = vunpack.c.l.b16 %v382
        %v767 = vunpack.c.l.b16 %v383
        %v768 = vunpack.c.l.b16 %v384
        %v769 = vunpack.c.l.b16 %v385
        %v770 = vunpack.c.l.b16 %v386
        %v771 = vunpack.c.l.b16 %v387
        %v772 = vunpack.c.l.b16 %v388
        %v773 = vunpack.c.l.b16 %v389
        %v774 = vunpack.c.l.b16 %v390
        %v775 = vpack.c.b16 %v744, %v743
        %v776 = vpack.c.b16 %v746, %v745
        %v777 = vpack.c.b16 %v748, %v747
        %v778 = vpack.c.b16 %v750, %v749
        %v779 = vpack.c.b16 %v752, %v751
        %v780 = vpack.c.b16 %v754, %v753
        %v781 = vpack.c.b16 %v756, %v755
        %v782 = vpack.c.b16 %v758, %v757
        %v783 = vpack.c.b16 %v760, %v759
        %v784 = vpack.c.b16 %v762, %v761
        %v785 = vpack.c.b16 %v764, %v763
        %v786 = vpack.c.b16 %v766, %v765
        %v787 = vpack.c.b16 %v768, %v767
        %v788 = vpack.c.b16 %v770, %v769
        %v789 = vpack.c.b16 %v772, %v771
        %v790 = vpack.c.b16 %v774, %v773
        %807 = vmatprep.subr.bf16.mxu0 0
        %808 = vmatpush1.bf16.msra.mxu0 %v775
        %809 = vmatprep.subr.bf16.mxu0 0
        %810 = vmatpush1.bf16.msra.mxu0 %v776
        %811 = vmatprep.subr.bf16.mxu0 0
        %812 = vmatpush1.bf16.msra.mxu0 %v777
        %813 = vmatprep.subr.bf16.mxu0 0
        %814 = vmatpush1.bf16.msra.mxu0 %v778
        %815 = vmatprep.subr.bf16.mxu0 0
        %816 = vmatpush1.bf16.msra.mxu0 %v779
        %817 = vmatprep.subr.bf16.mxu0 0
        %818 = vmatpush1.bf16.msra.mxu0 %v780
        %819 = vmatprep.subr.bf16.mxu0 0
        %820 = vmatpush1.bf16.msra.mxu0 %v781
        %821 = vmatprep.subr.bf16.mxu0 0
        %822 = vmatpush1.bf16.msra.mxu0 %v782
        %823 = vmatprep.subr.bf16.mxu0 0
        %824 = vmatpush1.bf16.msra.mxu0 %v783
        %825 = vmatprep.subr.bf16.mxu0 0
        %826 = vmatpush1.bf16.msra.mxu0 %v784
        %827 = vmatprep.subr.bf16.mxu0 0
        %828 = vmatpush1.bf16.msra.mxu0 %v785
        %829 = vmatprep.subr.bf16.mxu0 0
        %830 = vmatpush1.bf16.msra.mxu0 %v786
        %831 = vmatprep.subr.bf16.mxu0 0
        %832 = vmatpush1.bf16.msra.mxu0 %v787
        %833 = vmatprep.subr.bf16.mxu0 0
        %834 = vmatpush1.bf16.msra.mxu0 %v788
        %835 = vmatprep.subr.bf16.mxu0 0
        %836 = vmatpush1.bf16.msra.mxu0 %v789
        %837 = vmatprep.subr.bf16.mxu0 0
        %838 = vmatpush1.bf16.msra.mxu0 %v790
        %839 = vmatprep.mubr.bf16.mxu0 %v584
        %840 = vmatmul.mubr.bf16.gmra.mrb[0].mxu0 %v583
        %v841 = vpop.f32.mrb[0].mxu0
        %v842 = vadd.f32 0.0, %v841
        %v843 = vpop.f32.mrb[0].mxu0
        %v844 = vpop.f32.mrb[0].mxu0
        %v845 = vadd.f32 0.0, %v844
        %v846 = vpop.f32.mrb[0].mxu0
        %847 = vmatprep.mubr.bf16.mxu0 %v586
        %848 = vmatmul.mubr.bf16.gmra.mrb[0].mxu0 %v585
        %v849 = vpop.f32.mrb[0].mxu0
        %v850 = vadd.f32 0.0, %v849
        %v851 = vpop.f32.mrb[0].mxu0
        %v852 = vpop.f32.mrb[0].mxu0
        %v853 = vadd.f32 0.0, %v852
        %v854 = vpop.f32.mrb[0].mxu0
        %855 = vmatprep.mubr.bf16.mxu0 %v588
        %856 = vmatmul.mubr.bf16.gmra.mrb[0].mxu0 %v587
        %v857 = vpop.f32.mrb[0].mxu0
        %v858 = vadd.f32 0.0, %v857
        %v859 = vpop.f32.mrb[0].mxu0
        %v860 = vpop.f32.mrb[0].mxu0
        %v861 = vadd.f32 0.0, %v860
        %v862 = vpop.f32.mrb[0].mxu0
        %863 = vmatprep.mubr.bf16.mxu0 %v590
        %864 = vmatmul.mubr.bf16.gmra.mrb[0].mxu0 %v589
        %v865 = vpop.f32.mrb[0].mxu0
        %v866 = vadd.f32 0.0, %v865
        %v867 = vpop.f32.mrb[0].mxu0
        %v868 = vpop.f32.mrb[0].mxu0
        %v869 = vadd.f32 0.0, %v868
        %v870 = vpop.f32.mrb[0].mxu0
        %871 = vmatprep.mubr.bf16.mxu0 %v592
        %872 = vmatmul.mubr.bf16.gmra.mrb[0].mxu0 %v591
        %v873 = vpop.f32.mrb[0].mxu0
        %v874 = vadd.f32 0.0, %v873
        %v875 = vpop.f32.mrb[0].mxu0
        %v876 = vpop.f32.mrb[0].mxu0
        %v877 = vadd.f32 0.0, %v876
        %v878 = vpop.f32.mrb[0].mxu0
        %879 = vmatprep.mubr.bf16.mxu0 %v594
        %880 = vmatmul.mubr.bf16.gmra.mrb[0].mxu0 %v593
        %v881 = vpop.f32.mrb[0].mxu0
        %v882 = vadd.f32 0.0, %v881
        %v883 = vpop.f32.mrb[0].mxu0
        %v884 = vpop.f32.mrb[0].mxu0
        %v885 = vadd.f32 0.0, %v884
        %v886 = vpop.f32.mrb[0].mxu0
        %887 = vmatprep.mubr.bf16.mxu0 %v596
        %888 = vmatmul.mubr.bf16.gmra.mrb[0].mxu0 %v595
        %v889 = vpop.f32.mrb[0].mxu0
        %v890 = vadd.f32 0.0, %v889
        %v891 = vpop.f32.mrb[0].mxu0
        %v892 = vpop.f32.mrb[0].mxu0
        %v893 = vadd.f32 0.0, %v892
        %v894 = vpop.f32.mrb[0].mxu0
        %895 = vmatprep.mubr.bf16.mxu0 %v598
        %896 = vmatmul.mubr.bf16.gmra.mrb[0].mxu0 %v597
        %v897 = vpop.f32.mrb[0].mxu0
        %v898 = vadd.f32 0.0, %v897
        %v899 = vpop.f32.mrb[0].mxu0
        %v900 = vpop.f32.mrb[0].mxu0
        %v901 = vadd.f32 0.0, %v900
        %v902 = vpop.f32.mrb[0].mxu0
        %903 = vmatprep.mubr.bf16.mxu0 %v600
        %904 = vmatmul.mubr.bf16.gmra.mrb[0].mxu0 %v599
        %v905 = vpop.f32.mrb[0].mxu0
        %v906 = vadd.f32 0.0, %v905
        %v907 = vpop.f32.mrb[0].mxu0
        %v908 = vpop.f32.mrb[0].mxu0
        %v909 = vadd.f32 0.0, %v908
        %v910 = vpop.f32.mrb[0].mxu0
        %911 = vmatprep.mubr.bf16.mxu0 %v602
        %912 = vmatmul.mubr.bf16.gmra.mrb[0].mxu0 %v601
        %v913 = vpop.f32.mrb[0].mxu0
        %v914 = vadd.f32 0.0, %v913
        %v915 = vpop.f32.mrb[0].mxu0
        %v916 = vpop.f32.mrb[0].mxu0
        %v917 = vadd.f32 0.0, %v916
        %v918 = vpop.f32.mrb[0].mxu0
        %919 = vmatprep.mubr.bf16.mxu0 %v604
        %920 = vmatmul.mubr.bf16.gmra.mrb[0].mxu0 %v603
        %v921 = vpop.f32.mrb[0].mxu0
        %v922 = vadd.f32 0.0, %v921
        %v923 = vpop.f32.mrb[0].mxu0
        %v924 = vpop.f32.mrb[0].mxu0
        %v925 = vadd.f32 0.0, %v924
        %v926 = vpop.f32.mrb[0].mxu0
        %927 = vmatprep.mubr.bf16.mxu0 %v606
        %928 = vmatmul.mubr.bf16.gmra.mrb[0].mxu0 %v605
        %v929 = vpop.f32.mrb[0].mxu0
        %v930 = vadd.f32 0.0, %v929
        %v931 = vpop.f32.mrb[0].mxu0
        %v932 = vpop.f32.mrb[0].mxu0
        %v933 = vadd.f32 0.0, %v932
        %v934 = vpop.f32.mrb[0].mxu0
        %935 = vmatprep.mubr.bf16.mxu0 %v608
        %936 = vmatmul.mubr.bf16.gmra.mrb[0].mxu0 %v607
        %v937 = vpop.f32.mrb[0].mxu0
        %v938 = vadd.f32 0.0, %v937
        %v939 = vpop.f32.mrb[0].mxu0
        %v940 = vpop.f32.mrb[0].mxu0
        %v941 = vadd.f32 0.0, %v940
        %v942 = vpop.f32.mrb[0].mxu0
        %943 = vmatprep.mubr.bf16.mxu0 %v610
        %944 = vmatmul.mubr.bf16.gmra.mrb[0].mxu0 %v609
        %v945 = vpop.f32.mrb[0].mxu0
        %v946 = vadd.f32 0.0, %v945
        %v947 = vpop.f32.mrb[0].mxu0
        %v948 = vpop.f32.mrb[0].mxu0
        %v949 = vadd.f32 0.0, %v948
        %v950 = vpop.f32.mrb[0].mxu0
        %951 = vmatprep.mubr.bf16.mxu0 %v612
        %952 = vmatmul.mubr.bf16.gmra.mrb[0].mxu0 %v611
        %v953 = vpop.f32.mrb[0].mxu0
        %v954 = vadd.f32 0.0, %v953
        %v955 = vpop.f32.mrb[0].mxu0
        %v956 = vpop.f32.mrb[0].mxu0
        %v957 = vadd.f32 0.0, %v956
        %v958 = vpop.f32.mrb[0].mxu0
        %959 = vmatprep.mubr.bf16.mxu0 %v614
        %960 = vmatmul.mubr.bf16.gmra.mrb[0].mxu0 %v613
        %v961 = vpop.f32.mrb[0].mxu0
        %v962 = vadd.f32 0.0, %v961
        %v963 = vpop.f32.mrb[0].mxu0
        %v964 = vpop.f32.mrb[0].mxu0
        %v965 = vadd.f32 0.0, %v964
        %v966 = vpop.f32.mrb[0].mxu0
        %967 = vmatprep.mubr.bf16.mxu0 %v616
        %968 = vmatmul.mubr.bf16.gmra.mrb[0].mxu0 %v615
        %v969 = vpop.f32.mrb[0].mxu0
        %v970 = vadd.f32 0.0, %v969
        %v971 = vpop.f32.mrb[0].mxu0
        %v972 = vpop.f32.mrb[0].mxu0
        %v973 = vadd.f32 0.0, %v972
        %v974 = vpop.f32.mrb[0].mxu0
        %975 = vmatprep.mubr.bf16.mxu0 %v618
        %976 = vmatmul.mubr.bf16.gmra.mrb[0].mxu0 %v617
        %v977 = vpop.f32.mrb[0].mxu0
        %v978 = vadd.f32 0.0, %v977
        %v979 = vpop.f32.mrb[0].mxu0
        %v980 = vpop.f32.mrb[0].mxu0
        %v981 = vadd.f32 0.0, %v980
        %v982 = vpop.f32.mrb[0].mxu0
        %983 = vmatprep.mubr.bf16.mxu0 %v620
        %984 = vmatmul.mubr.bf16.gmra.mrb[0].mxu0 %v619
        %v985 = vpop.f32.mrb[0].mxu0
        %v986 = vadd.f32 0.0, %v985
        %v987 = vpop.f32.mrb[0].mxu0
        %v988 = vpop.f32.mrb[0].mxu0
        %v989 = vadd.f32 0.0, %v988
        %v990 = vpop.f32.mrb[0].mxu0
        %991 = vmatprep.mubr.bf16.mxu0 %v622
        %992 = vmatmul.mubr.bf16.gmra.mrb[0].mxu0 %v621
        %v993 = vpop.f32.mrb[0].mxu0
        %v994 = vadd.f32 0.0, %v993
        %v995 = vpop.f32.mrb[0].mxu0
        %v996 = vpop.f32.mrb[0].mxu0
        %v997 = vadd.f32 0.0, %v996
        %v998 = vpop.f32.mrb[0].mxu0
        %999 = vmatprep.mubr.bf16.mxu0 %v624
        %1000 = vmatmul.mubr.bf16.gmra.mrb[0].mxu0 %v623
        %v1001 = vpop.f32.mrb[0].mxu0
        %v1002 = vadd.f32 0.0, %v1001
        %v1003 = vpop.f32.mrb[0].mxu0
        %v1004 = vpop.f32.mrb[0].mxu0
        %v1005 = vadd.f32 0.0, %v1004
        %v1006 = vpop.f32.mrb[0].mxu0
        %1007 = vmatprep.mubr.bf16.mxu0 %v626
        %1008 = vmatmul.mubr.bf16.gmra.mrb[0].mxu0 %v625
        %v1009 = vpop.f32.mrb[0].mxu0
        %v1010 = vadd.f32 0.0, %v1009
        %v1011 = vpop.f32.mrb[0].mxu0
        %v1012 = vpop.f32.mrb[0].mxu0
        %v1013 = vadd.f32 0.0, %v1012
        %v1014 = vpop.f32.mrb[0].mxu0
        %1015 = vmatprep.mubr.bf16.mxu0 %v628
        %1016 = vmatmul.mubr.bf16.gmra.mrb[0].mxu0 %v627
        %v1017 = vpop.f32.mrb[0].mxu0
        %v1018 = vadd.f32 0.0, %v1017
        %v1019 = vpop.f32.mrb[0].mxu0
        %v1020 = vpop.f32.mrb[0].mxu0
        %v1021 = vadd.f32 0.0, %v1020
        %v1022 = vpop.f32.mrb[0].mxu0
        %1023 = vmatprep.mubr.bf16.mxu0 %v630
        %1024 = vmatmul.mubr.bf16.gmra.mrb[0].mxu0 %v629
        %v1025 = vpop.f32.mrb[0].mxu0
        %v1026 = vadd.f32 0.0, %v1025
        %v1027 = vpop.f32.mrb[0].mxu0
        %v1028 = vpop.f32.mrb[0].mxu0
        %v1029 = vadd.f32 0.0, %v1028
        %v1030 = vpop.f32.mrb[0].mxu0
        %1031 = vmatprep.mubr.bf16.mxu0 %v632
        %1032 = vmatmul.mubr.bf16.gmra.mrb[0].mxu0 %v631
        %v1033 = vpop.f32.mrb[0].mxu0
        %v1034 = vadd.f32 0.0, %v1033
        %v1035 = vpop.f32.mrb[0].mxu0
        %v1036 = vpop.f32.mrb[0].mxu0
        %v1037 = vadd.f32 0.0, %v1036
        %v1038 = vpop.f32.mrb[0].mxu0
        %1039 = vmatprep.mubr.bf16.mxu0 %v634
        %1040 = vmatmul.mubr.bf16.gmra.mrb[0].mxu0 %v633
        %v1041 = vpop.f32.mrb[0].mxu0
        %v1042 = vadd.f32 0.0, %v1041
        %v1043 = vpop.f32.mrb[0].mxu0
        %v1044 = vpop.f32.mrb[0].mxu0
        %v1045 = vadd.f32 0.0, %v1044
        %v1046 = vpop.f32.mrb[0].mxu0
        %1047 = vmatprep.mubr.bf16.mxu0 %v636
        %1048 = vmatmul.mubr.bf16.gmra.mrb[0].mxu0 %v635
        %v1049 = vpop.f32.mrb[0].mxu0
        %v1050 = vadd.f32 0.0, %v1049
        %v1051 = vpop.f32.mrb[0].mxu0
        %v1052 = vpop.f32.mrb[0].mxu0
        %v1053 = vadd.f32 0.0, %v1052
        %v1054 = vpop.f32.mrb[0].mxu0
        %1055 = vmatprep.mubr.bf16.mxu0 %v638
        %1056 = vmatmul.mubr.bf16.gmra.mrb[0].mxu0 %v637
        %v1057 = vpop.f32.mrb[0].mxu0
        %v1058 = vadd.f32 0.0, %v1057
        %v1059 = vpop.f32.mrb[0].mxu0
        %v1060 = vpop.f32.mrb[0].mxu0
        %v1061 = vadd.f32 0.0, %v1060
        %v1062 = vpop.f32.mrb[0].mxu0
        %1063 = vmatprep.mubr.bf16.mxu0 %v640
        %1064 = vmatmul.mubr.bf16.gmra.mrb[0].mxu0 %v639
        %v1065 = vpop.f32.mrb[0].mxu0
        %v1066 = vadd.f32 0.0, %v1065
        %v1067 = vpop.f32.mrb[0].mxu0
        %v1068 = vpop.f32.mrb[0].mxu0
        %v1069 = vadd.f32 0.0, %v1068
        %v1070 = vpop.f32.mrb[0].mxu0
        %1071 = vmatprep.mubr.bf16.mxu0 %v642
        %1072 = vmatmul.mubr.bf16.gmra.mrb[0].mxu0 %v641
        %v1073 = vpop.f32.mrb[0].mxu0
        %v1074 = vadd.f32 0.0, %v1073
        %v1075 = vpop.f32.mrb[0].mxu0
        %v1076 = vpop.f32.mrb[0].mxu0
        %v1077 = vadd.f32 0.0, %v1076
        %v1078 = vpop.f32.mrb[0].mxu0
        %1079 = vmatprep.mubr.bf16.mxu0 %v644
        %1080 = vmatmul.mubr.bf16.gmra.mrb[0].mxu0 %v643
        %v1081 = vpop.f32.mrb[0].mxu0
        %v1082 = vadd.f32 0.0, %v1081
        %v1083 = vpop.f32.mrb[0].mxu0
        %v1084 = vpop.f32.mrb[0].mxu0
        %v1085 = vadd.f32 0.0, %v1084
        %v1086 = vpop.f32.mrb[0].mxu0
        %1087 = vmatprep.mubr.bf16.mxu0 %v646
        %1088 = vmatmul.mubr.bf16.gmra.mrb[0].mxu0 %v645
        %v1089 = vpop.f32.mrb[0].mxu0
        %v1090 = vadd.f32 0.0, %v1089
        %v1091 = vpop.f32.mrb[0].mxu0
        %v1092 = vpop.f32.mrb[0].mxu0
        %v1093 = vadd.f32 0.0, %v1092
        %v1094 = vpop.f32.mrb[0].mxu0
        %1095 = vdwg.mxu0
        %v1096 = vld [vmem:[#allocation7] sm:$0x1]
        %v1098 = vlaneseq
        %v1099 = vshrl.u32 %v1098, 7
        %v1100 = vsub.s32 0, %v1099
        %v1101 = vrot.slane %v1096, %v1100
        %v1103 = vmul.f32 %v842, %v1101
        %v1104 = vmul.f32 %v845, %v1101
        %v1105 = vmul.f32 %v850, %v1101
        %v1106 = vmul.f32 %v853, %v1101
        %v1107 = vmul.f32 %v858, %v1101
        %v1108 = vmul.f32 %v861, %v1101
        %v1109 = vmul.f32 %v866, %v1101
        %v1110 = vmul.f32 %v869, %v1101
        %v1111 = vmul.f32 %v874, %v1101
        %v1112 = vmul.f32 %v877, %v1101
        %v1113 = vmul.f32 %v882, %v1101
        %v1114 = vmul.f32 %v885, %v1101
        %v1115 = vmul.f32 %v890, %v1101
        %v1116 = vmul.f32 %v893, %v1101
        %v1117 = vmul.f32 %v898, %v1101
        %v1118 = vmul.f32 %v901, %v1101
        %v1119 = vmul.f32 %v906, %v1101
        %v1120 = vmul.f32 %v909, %v1101
        %v1121 = vmul.f32 %v914, %v1101
        %v1122 = vmul.f32 %v917, %v1101
        %v1123 = vmul.f32 %v922, %v1101
        %v1124 = vmul.f32 %v925, %v1101
        %v1125 = vmul.f32 %v930, %v1101
        %v1126 = vmul.f32 %v933, %v1101
        %v1127 = vmul.f32 %v938, %v1101
        %v1128 = vmul.f32 %v941, %v1101
        %v1129 = vmul.f32 %v946, %v1101
        %v1130 = vmul.f32 %v949, %v1101
        %v1131 = vmul.f32 %v954, %v1101
        %v1132 = vmul.f32 %v957, %v1101
        %v1133 = vmul.f32 %v962, %v1101
        %v1134 = vmul.f32 %v965, %v1101
        %v1135 = vmul.f32 %v970, %v1101
        %v1136 = vmul.f32 %v973, %v1101
        %v1137 = vmul.f32 %v978, %v1101
        %v1138 = vmul.f32 %v981, %v1101
        %v1139 = vmul.f32 %v986, %v1101
        %v1140 = vmul.f32 %v989, %v1101
        %v1141 = vmul.f32 %v994, %v1101
        %v1142 = vmul.f32 %v997, %v1101
        %v1143 = vmul.f32 %v1002, %v1101
        %v1144 = vmul.f32 %v1005, %v1101
        %v1145 = vmul.f32 %v1010, %v1101
        %v1146 = vmul.f32 %v1013, %v1101
        %v1147 = vmul.f32 %v1018, %v1101
        %v1148 = vmul.f32 %v1021, %v1101
        %v1149 = vmul.f32 %v1026, %v1101
        %v1150 = vmul.f32 %v1029, %v1101
        %v1151 = vmul.f32 %v1034, %v1101
        %v1152 = vmul.f32 %v1037, %v1101
        %v1153 = vmul.f32 %v1042, %v1101
        %v1154 = vmul.f32 %v1045, %v1101
        %v1155 = vmul.f32 %v1050, %v1101
        %v1156 = vmul.f32 %v1053, %v1101
        %v1157 = vmul.f32 %v1058, %v1101
        %v1158 = vmul.f32 %v1061, %v1101
        %v1159 = vmul.f32 %v1066, %v1101
        %v1160 = vmul.f32 %v1069, %v1101
        %v1161 = vmul.f32 %v1074, %v1101
        %v1162 = vmul.f32 %v1077, %v1101
        %v1163 = vmul.f32 %v1082, %v1101
        %v1164 = vmul.f32 %v1085, %v1101
        %v1165 = vmul.f32 %v1090, %v1101
        %v1166 = vmul.f32 %v1093, %v1101
        %v1167 = vld [vmem:[#allocation8] sm:$0x1]
        %v1169 = vlaneseq
        %v1170 = vshrl.u32 %v1169, 7
        %v1171 = vsub.s32 0, %v1170
        %v1172 = vrot.slane %v1167, %v1171
        %v1174 = vadd.f32 %v1103, %v1172
        %v1175 = vadd.f32 %v1104, %v1172
        %v1176 = vadd.f32 %v1105, %v1172
        %v1177 = vadd.f32 %v1106, %v1172
        %v1178 = vadd.f32 %v1107, %v1172
        %v1179 = vadd.f32 %v1108, %v1172
        %v1180 = vadd.f32 %v1109, %v1172
        %v1181 = vadd.f32 %v1110, %v1172
        %v1182 = vadd.f32 %v1111, %v1172
        %v1183 = vadd.f32 %v1112, %v1172
        %v1184 = vadd.f32 %v1113, %v1172
        %v1185 = vadd.f32 %v1114, %v1172
        %v1186 = vadd.f32 %v1115, %v1172
        %v1187 = vadd.f32 %v1116, %v1172
        %v1188 = vadd.f32 %v1117, %v1172
        %v1189 = vadd.f32 %v1118, %v1172
        %v1190 = vadd.f32 %v1119, %v1172
        %v1191 = vadd.f32 %v1120, %v1172
        %v1192 = vadd.f32 %v1121, %v1172
        %v1193 = vadd.f32 %v1122, %v1172
        %v1194 = vadd.f32 %v1123, %v1172
        %v1195 = vadd.f32 %v1124, %v1172
        %v1196 = vadd.f32 %v1125, %v1172
        %v1197 = vadd.f32 %v1126, %v1172
        %v1198 = vadd.f32 %v1127, %v1172
        %v1199 = vadd.f32 %v1128, %v1172
        %v1200 = vadd.f32 %v1129, %v1172
        %v1201 = vadd.f32 %v1130, %v1172
        %v1202 = vadd.f32 %v1131, %v1172
        %v1203 = vadd.f32 %v1132, %v1172
        %v1204 = vadd.f32 %v1133, %v1172
        %v1205 = vadd.f32 %v1134, %v1172
        %v1206 = vadd.f32 %v1135, %v1172
        %v1207 = vadd.f32 %v1136, %v1172
        %v1208 = vadd.f32 %v1137, %v1172
        %v1209 = vadd.f32 %v1138, %v1172
        %v1210 = vadd.f32 %v1139, %v1172
        %v1211 = vadd.f32 %v1140, %v1172
        %v1212 = vadd.f32 %v1141, %v1172
        %v1213 = vadd.f32 %v1142, %v1172
        %v1214 = vadd.f32 %v1143, %v1172
        %v1215 = vadd.f32 %v1144, %v1172
        %v1216 = vadd.f32 %v1145, %v1172
        %v1217 = vadd.f32 %v1146, %v1172
        %v1218 = vadd.f32 %v1147, %v1172
        %v1219 = vadd.f32 %v1148, %v1172
        %v1220 = vadd.f32 %v1149, %v1172
        %v1221 = vadd.f32 %v1150, %v1172
        %v1222 = vadd.f32 %v1151, %v1172
        %v1223 = vadd.f32 %v1152, %v1172
        %v1224 = vadd.f32 %v1153, %v1172
        %v1225 = vadd.f32 %v1154, %v1172
        %v1226 = vadd.f32 %v1155, %v1172
        %v1227 = vadd.f32 %v1156, %v1172
        %v1228 = vadd.f32 %v1157, %v1172
        %v1229 = vadd.f32 %v1158, %v1172
        %v1230 = vadd.f32 %v1159, %v1172
        %v1231 = vadd.f32 %v1160, %v1172
        %v1232 = vadd.f32 %v1161, %v1172
        %v1233 = vadd.f32 %v1162, %v1172
        %v1234 = vadd.f32 %v1163, %v1172
        %v1235 = vadd.f32 %v1164, %v1172
        %v1236 = vadd.f32 %v1165, %v1172
        %v1237 = vadd.f32 %v1166, %v1172
        %v1238 = vmax.f32 %v1174, 0.0
        %v1239 = vmax.f32 %v1175, 0.0
        %v1240 = vmax.f32 %v1176, 0.0
        %v1241 = vmax.f32 %v1177, 0.0
        %v1242 = vmax.f32 %v1178, 0.0
        %v1243 = vmax.f32 %v1179, 0.0
        %v1244 = vmax.f32 %v1180, 0.0
        %v1245 = vmax.f32 %v1181, 0.0
        %v1246 = vmax.f32 %v1182, 0.0
        %v1247 = vmax.f32 %v1183, 0.0
        %v1248 = vmax.f32 %v1184, 0.0
        %v1249 = vmax.f32 %v1185, 0.0
        %v1250 = vmax.f32 %v1186, 0.0
        %v1251 = vmax.f32 %v1187, 0.0
        %v1252 = vmax.f32 %v1188, 0.0
        %v1253 = vmax.f32 %v1189, 0.0
        %v1254 = vmax.f32 %v1190, 0.0
        %v1255 = vmax.f32 %v1191, 0.0
        %v1256 = vmax.f32 %v1192, 0.0
        %v1257 = vmax.f32 %v1193, 0.0
        %v1258 = vmax.f32 %v1194, 0.0
        %v1259 = vmax.f32 %v1195, 0.0
        %v1260 = vmax.f32 %v1196, 0.0
        %v1261 = vmax.f32 %v1197, 0.0
        %v1262 = vmax.f32 %v1198, 0.0
        %v1263 = vmax.f32 %v1199, 0.0
        %v1264 = vmax.f32 %v1200, 0.0
        %v1265 = vmax.f32 %v1201, 0.0
        %v1266 = vmax.f32 %v1202, 0.0
        %v1267 = vmax.f32 %v1203, 0.0
        %v1268 = vmax.f32 %v1204, 0.0
        %v1269 = vmax.f32 %v1205, 0.0
        %v1270 = vmax.f32 %v1206, 0.0
        %v1271 = vmax.f32 %v1207, 0.0
        %v1272 = vmax.f32 %v1208, 0.0
        %v1273 = vmax.f32 %v1209, 0.0
        %v1274 = vmax.f32 %v1210, 0.0
        %v1275 = vmax.f32 %v1211, 0.0
        %v1276 = vmax.f32 %v1212, 0.0
        %v1277 = vmax.f32 %v1213, 0.0
        %v1278 = vmax.f32 %v1214, 0.0
        %v1279 = vmax.f32 %v1215, 0.0
        %v1280 = vmax.f32 %v1216, 0.0
        %v1281 = vmax.f32 %v1217, 0.0
        %v1282 = vmax.f32 %v1218, 0.0
        %v1283 = vmax.f32 %v1219, 0.0
        %v1284 = vmax.f32 %v1220, 0.0
        %v1285 = vmax.f32 %v1221, 0.0
        %v1286 = vmax.f32 %v1222, 0.0
        %v1287 = vmax.f32 %v1223, 0.0
        %v1288 = vmax.f32 %v1224, 0.0
        %v1289 = vmax.f32 %v1225, 0.0
        %v1290 = vmax.f32 %v1226, 0.0
        %v1291 = vmax.f32 %v1227, 0.0
        %v1292 = vmax.f32 %v1228, 0.0
        %v1293 = vmax.f32 %v1229, 0.0
        %v1294 = vmax.f32 %v1230, 0.0
        %v1295 = vmax.f32 %v1231, 0.0
        %v1296 = vmax.f32 %v1232, 0.0
        %v1297 = vmax.f32 %v1233, 0.0
        %v1298 = vmax.f32 %v1234, 0.0
        %v1299 = vmax.f32 %v1235, 0.0
        %v1300 = vmax.f32 %v1236, 0.0
        %v1301 = vmax.f32 %v1237, 0.0
        %v1302 = vpack.c.bf16 %v1239, %v1238
        %v1303 = vpack.c.bf16 %v1241, %v1240
        %v1304 = vpack.c.bf16 %v1243, %v1242
        %v1305 = vpack.c.bf16 %v1245, %v1244
        %v1306 = vpack.c.bf16 %v1247, %v1246
        %v1307 = vpack.c.bf16 %v1249, %v1248
        %v1308 = vpack.c.bf16 %v1251, %v1250
        %v1309 = vpack.c.bf16 %v1253, %v1252
        %v1310 = vpack.c.bf16 %v1255, %v1254
        %v1311 = vpack.c.bf16 %v1257, %v1256
        %v1312 = vpack.c.bf16 %v1259, %v1258
        %v1313 = vpack.c.bf16 %v1261, %v1260
        %v1314 = vpack.c.bf16 %v1263, %v1262
        %v1315 = vpack.c.bf16 %v1265, %v1264
        %v1316 = vpack.c.bf16 %v1267, %v1266
        %v1317 = vpack.c.bf16 %v1269, %v1268
        %v1318 = vpack.c.bf16 %v1271, %v1270
        %v1319 = vpack.c.bf16 %v1273, %v1272
        %v1320 = vpack.c.bf16 %v1275, %v1274
        %v1321 = vpack.c.bf16 %v1277, %v1276
        %v1322 = vpack.c.bf16 %v1279, %v1278
        %v1323 = vpack.c.bf16 %v1281, %v1280
        %v1324 = vpack.c.bf16 %v1283, %v1282
        %v1325 = vpack.c.bf16 %v1285, %v1284
        %v1326 = vpack.c.bf16 %v1287, %v1286
        %v1327 = vpack.c.bf16 %v1289, %v1288
        %v1328 = vpack.c.bf16 %v1291, %v1290
        %v1329 = vpack.c.bf16 %v1293, %v1292
        %v1330 = vpack.c.bf16 %v1295, %v1294
        %v1331 = vpack.c.bf16 %v1297, %v1296
        %v1332 = vpack.c.bf16 %v1299, %v1298
        %v1333 = vpack.c.bf16 %v1301, %v1300
        %v1366 = vunpack.c.l.b16 %v1302
        %v1367 = vunpack.c.h.b16 %v1302
        %v1368 = vunpack.c.l.b16 %v1303
        %v1369 = vunpack.c.h.b16 %v1303
        %v1370 = vunpack.c.l.b16 %v1304
        %v1371 = vunpack.c.h.b16 %v1304
        %v1372 = vunpack.c.l.b16 %v1305
        %v1373 = vunpack.c.h.b16 %v1305
        %v1374 = vunpack.c.l.b16 %v1306
        %v1375 = vunpack.c.h.b16 %v1306
        %v1376 = vunpack.c.l.b16 %v1307
        %v1377 = vunpack.c.h.b16 %v1307
        %v1378 = vunpack.c.l.b16 %v1308
        %v1379 = vunpack.c.h.b16 %v1308
        %v1380 = vunpack.c.l.b16 %v1309
        %v1381 = vunpack.c.h.b16 %v1309
        %v1382 = vunpack.c.l.b16 %v1310
        %v1383 = vunpack.c.h.b16 %v1310
        %v1384 = vunpack.c.l.b16 %v1311
        %v1385 = vunpack.c.h.b16 %v1311
        %v1386 = vunpack.c.l.b16 %v1312
        %v1387 = vunpack.c.h.b16 %v1312
        %v1388 = vunpack.c.l.b16 %v1313
        %v1389 = vunpack.c.h.b16 %v1313
        %v1390 = vunpack.c.l.b16 %v1314
        %v1391 = vunpack.c.h.b16 %v1314
        %v1392 = vunpack.c.l.b16 %v1315
        %v1393 = vunpack.c.h.b16 %v1315
        %v1394 = vunpack.c.l.b16 %v1316
        %v1395 = vunpack.c.h.b16 %v1316
        %v1396 = vunpack.c.l.b16 %v1317
        %v1397 = vunpack.c.h.b16 %v1317
        %v1398 = vunpack.c.l.b16 %v1318
        %v1399 = vunpack.c.h.b16 %v1318
        %v1400 = vunpack.c.l.b16 %v1319
        %v1401 = vunpack.c.h.b16 %v1319
        %v1402 = vunpack.c.l.b16 %v1320
        %v1403 = vunpack.c.h.b16 %v1320
        %v1404 = vunpack.c.l.b16 %v1321
        %v1405 = vunpack.c.h.b16 %v1321
        %v1406 = vunpack.c.l.b16 %v1322
        %v1407 = vunpack.c.h.b16 %v1322
        %v1408 = vunpack.c.l.b16 %v1323
        %v1409 = vunpack.c.h.b16 %v1323
        %v1410 = vunpack.c.l.b16 %v1324
        %v1411 = vunpack.c.h.b16 %v1324
        %v1412 = vunpack.c.l.b16 %v1325
        %v1413 = vunpack.c.h.b16 %v1325
        %v1414 = vunpack.c.l.b16 %v1326
        %v1415 = vunpack.c.h.b16 %v1326
        %v1416 = vunpack.c.l.b16 %v1327
        %v1417 = vunpack.c.h.b16 %v1327
        %v1418 = vunpack.c.l.b16 %v1328
        %v1419 = vunpack.c.h.b16 %v1328
        %v1420 = vunpack.c.l.b16 %v1329
        %v1421 = vunpack.c.h.b16 %v1329
        %v1422 = vunpack.c.l.b16 %v1330
        %v1423 = vunpack.c.h.b16 %v1330
        %v1424 = vunpack.c.l.b16 %v1331
        %v1425 = vunpack.c.h.b16 %v1331
        %v1426 = vunpack.c.l.b16 %v1332
        %v1427 = vunpack.c.h.b16 %v1332
        %v1428 = vunpack.c.l.b16 %v1333
        %v1429 = vunpack.c.h.b16 %v1333
        %v1430 = vpack.c.b16 %v1366, %v1366
        %v1431 = vpack.c.b16 %v1367, %v1367
        %v1432 = vpack.c.b16 %v1368, %v1368
        %v1433 = vpack.c.b16 %v1369, %v1369
        %v1434 = vpack.c.b16 %v1370, %v1370
        %v1435 = vpack.c.b16 %v1371, %v1371
        %v1436 = vpack.c.b16 %v1372, %v1372
        %v1437 = vpack.c.b16 %v1373, %v1373
        %v1438 = vpack.c.b16 %v1374, %v1374
        %v1439 = vpack.c.b16 %v1375, %v1375
        %v1440 = vpack.c.b16 %v1376, %v1376
        %v1441 = vpack.c.b16 %v1377, %v1377
        %v1442 = vpack.c.b16 %v1378, %v1378
        %v1443 = vpack.c.b16 %v1379, %v1379
        %v1444 = vpack.c.b16 %v1380, %v1380
        %v1445 = vpack.c.b16 %v1381, %v1381
        %v1446 = vpack.c.b16 %v1382, %v1382
        %v1447 = vpack.c.b16 %v1383, %v1383
        %v1448 = vpack.c.b16 %v1384, %v1384
        %v1449 = vpack.c.b16 %v1385, %v1385
        %v1450 = vpack.c.b16 %v1386, %v1386
        %v1451 = vpack.c.b16 %v1387, %v1387
        %v1452 = vpack.c.b16 %v1388, %v1388
        %v1453 = vpack.c.b16 %v1389, %v1389
        %v1454 = vpack.c.b16 %v1390, %v1390
        %v1455 = vpack.c.b16 %v1391, %v1391
        %v1456 = vpack.c.b16 %v1392, %v1392
        %v1457 = vpack.c.b16 %v1393, %v1393
        %v1458 = vpack.c.b16 %v1394, %v1394
        %v1459 = vpack.c.b16 %v1395, %v1395
        %v1460 = vpack.c.b16 %v1396, %v1396
        %v1461 = vpack.c.b16 %v1397, %v1397
        %v1462 = vpack.c.b16 %v1398, %v1398
        %v1463 = vpack.c.b16 %v1399, %v1399
        %v1464 = vpack.c.b16 %v1400, %v1400
        %v1465 = vpack.c.b16 %v1401, %v1401
        %v1466 = vpack.c.b16 %v1402, %v1402
        %v1467 = vpack.c.b16 %v1403, %v1403
        %v1468 = vpack.c.b16 %v1404, %v1404
        %v1469 = vpack.c.b16 %v1405, %v1405
        %v1470 = vpack.c.b16 %v1406, %v1406
        %v1471 = vpack.c.b16 %v1407, %v1407
        %v1472 = vpack.c.b16 %v1408, %v1408
        %v1473 = vpack.c.b16 %v1409, %v1409
        %v1474 = vpack.c.b16 %v1410, %v1410
        %v1475 = vpack.c.b16 %v1411, %v1411
        %v1476 = vpack.c.b16 %v1412, %v1412
        %v1477 = vpack.c.b16 %v1413, %v1413
        %v1478 = vpack.c.b16 %v1414, %v1414
        %v1479 = vpack.c.b16 %v1415, %v1415
        %v1480 = vpack.c.b16 %v1416, %v1416
        %v1481 = vpack.c.b16 %v1417, %v1417
        %v1482 = vpack.c.b16 %v1418, %v1418
        %v1483 = vpack.c.b16 %v1419, %v1419
        %v1484 = vpack.c.b16 %v1420, %v1420
        %v1485 = vpack.c.b16 %v1421, %v1421
        %v1486 = vpack.c.b16 %v1422, %v1422
        %v1487 = vpack.c.b16 %v1423, %v1423
        %v1488 = vpack.c.b16 %v1424, %v1424
        %v1489 = vpack.c.b16 %v1425, %v1425
        %v1490 = vpack.c.b16 %v1426, %v1426
        %v1491 = vpack.c.b16 %v1427, %v1427
        %v1492 = vpack.c.b16 %v1428, %v1428
        %v1493 = vpack.c.b16 %v1429, %v1429
        %1558 = vst [vmem:[%s291] sm:$0xf] %v1430
        %1559 = vst [vmem:[%s291 + $0x4] sm:$0xf] %v1431
        %1560 = vst [vmem:[%s291 + $0x8] sm:$0xf] %v1432
        %1561 = vst [vmem:[%s291 + $0xc] sm:$0xf] %v1433
        %1562 = vst [vmem:[%s291 + $0x10] sm:$0xf] %v1434
        %1563 = vst [vmem:[%s291 + $0x14] sm:$0xf] %v1435
        %1564 = vst [vmem:[%s291 + $0x18] sm:$0xf] %v1436
        %1565 = vst [vmem:[%s291 + $0x1c] sm:$0xf] %v1437
        %1566 = vst [vmem:[%s291 + $0x20] sm:$0xf] %v1438
        %1567 = vst [vmem:[%s291 + $0x24] sm:$0xf] %v1439
        %1568 = vst [vmem:[%s291 + $0x28] sm:$0xf] %v1440
        %1569 = vst [vmem:[%s291 + $0x2c] sm:$0xf] %v1441
        %1570 = vst [vmem:[%s291 + $0x30] sm:$0xf] %v1442
        %1571 = vst [vmem:[%s291 + $0x34] sm:$0xf] %v1443
        %1572 = vst [vmem:[%s291 + $0x38] sm:$0xf] %v1444
        %1573 = vst [vmem:[%s291 + $0x3c] sm:$0xf] %v1445
        %1574 = vst [vmem:[%s291 + $0x40] sm:$0xf] %v1446
        %1575 = vst [vmem:[%s291 + $0x44] sm:$0xf] %v1447
        %1576 = vst [vmem:[%s291 + $0x48] sm:$0xf] %v1448
        %1577 = vst [vmem:[%s291 + $0x4c] sm:$0xf] %v1449
        %1578 = vst [vmem:[%s291 + $0x50] sm:$0xf] %v1450
        %1579 = vst [vmem:[%s291 + $0x54] sm:$0xf] %v1451
        %1580 = vst [vmem:[%s291 + $0x58] sm:$0xf] %v1452
        %1581 = vst [vmem:[%s291 + $0x5c] sm:$0xf] %v1453
        %1582 = vst [vmem:[%s291 + $0x60] sm:$0xf] %v1454
        %1583 = vst [vmem:[%s291 + $0x64] sm:$0xf] %v1455
        %1584 = vst [vmem:[%s291 + $0x68] sm:$0xf] %v1456
        %1585 = vst [vmem:[%s291 + $0x6c] sm:$0xf] %v1457
        %1586 = vst [vmem:[%s291 + $0x70] sm:$0xf] %v1458
        %1587 = vst [vmem:[%s291 + $0x74] sm:$0xf] %v1459
        %1588 = vst [vmem:[%s291 + $0x78] sm:$0xf] %v1460
        %1589 = vst [vmem:[%s291 + $0x7c] sm:$0xf] %v1461
        %1590 = vst [vmem:[%s291 + $0x80] sm:$0xf] %v1462
        %1591 = vst [vmem:[%s291 + $0x84] sm:$0xf] %v1463
        %1592 = vst [vmem:[%s291 + $0x88] sm:$0xf] %v1464
        %1593 = vst [vmem:[%s291 + $0x8c] sm:$0xf] %v1465
        %1594 = vst [vmem:[%s291 + $0x90] sm:$0xf] %v1466
        %1595 = vst [vmem:[%s291 + $0x94] sm:$0xf] %v1467
        %1596 = vst [vmem:[%s291 + $0x98] sm:$0xf] %v1468
        %1597 = vst [vmem:[%s291 + $0x9c] sm:$0xf] %v1469
        %1598 = vst [vmem:[%s291 + $0xa0] sm:$0xf] %v1470
        %1599 = vst [vmem:[%s291 + $0xa4] sm:$0xf] %v1471
        %1600 = vst [vmem:[%s291 + $0xa8] sm:$0xf] %v1472
        %1601 = vst [vmem:[%s291 + $0xac] sm:$0xf] %v1473
        %1602 = vst [vmem:[%s291 + $0xb0] sm:$0xf] %v1474
        %1603 = vst [vmem:[%s291 + $0xb4] sm:$0xf] %v1475
        %1604 = vst [vmem:[%s291 + $0xb8] sm:$0xf] %v1476
        %1605 = vst [vmem:[%s291 + $0xbc] sm:$0xf] %v1477
        %1606 = vst [vmem:[%s291 + $0xc0] sm:$0xf] %v1478
        %1607 = vst [vmem:[%s291 + $0xc4] sm:$0xf] %v1479
        %1608 = vst [vmem:[%s291 + $0xc8] sm:$0xf] %v1480
        %1609 = vst [vmem:[%s291 + $0xcc] sm:$0xf] %v1481
        %1610 = vst [vmem:[%s291 + $0xd0] sm:$0xf] %v1482
        %1611 = vst [vmem:[%s291 + $0xd4] sm:$0xf] %v1483
        %1612 = vst [vmem:[%s291 + $0xd8] sm:$0xf] %v1484
        %1613 = vst [vmem:[%s291 + $0xdc] sm:$0xf] %v1485
        %1614 = vst [vmem:[%s291 + $0xe0] sm:$0xf] %v1486
        %1615 = vst [vmem:[%s291 + $0xe4] sm:$0xf] %v1487
        %1616 = vst [vmem:[%s291 + $0xe8] sm:$0xf] %v1488
        %1617 = vst [vmem:[%s291 + $0xec] sm:$0xf] %v1489
        %1618 = vst [vmem:[%s291 + $0xf0] sm:$0xf] %v1490
        %1619 = vst [vmem:[%s291 + $0xf4] sm:$0xf] %v1491
        %1620 = vst [vmem:[%s291 + $0xf8] sm:$0xf] %v1492
        %1621 = vst [vmem:[%s291 + $0xfc] sm:$0xf] %v1493
        %s1622 = sand.u32 %s149, 1
        %s1623 = scalar_lea.sflag [#allocation4], %s1622
        %s1624 = sand.u32 %s149, 1
        %s1625 = smul.addr %s1624, 256
        %s1626 = scalar_lea.vmem [#allocation10], %s1625
        // Predicated region
        $region53: #{tpu_custom_call.1} parent=35 // pred_check
          %p1627 = pneg %p159
        $region54: #{tpu_custom_call.1} parent=35 // pred_check_branch
          %1629 = sbr.rel (%p1627) target = $region56
        $region55: #{tpu_custom_call.1} parent=35 // pred_region
          %s1630 = smul.u32 64, %s27
          %s1632 = ssub.s32 4096, 4096
          %1633 = vsyncadd %s1623, %s1632
          %s1634 = sadd.s32 %s28, %s1630
          %s1635 = smul.addr %s1634, 64
          %s1636 = scalar_lea.hbm %s4, %s1635
          %s1637 = sshll.u32 %s1626, 4
          %s1638 = int_to_ptr.vmem [resolvable:$true] %s1637
          %1643 = dma.vmem_to_hbm [thread:$0]  %s1638, 4096, %s1636, %s1623, 64, 64, 4
        $region56: #{tpu_custom_call.1} parent=35 // pred_fallthru
          _
      $region36: #{tpu_custom_call.1} parent=5 // pred_fallthru
        _
      %p1644 = scmp.le.s32.totalorder 2, %s18
      // Predicated region
      $region57: #{tpu_custom_call.1} parent=5 // pred_check
        %p1645 = pneg %p1644
      $region58: #{tpu_custom_call.1} parent=5 // pred_check_branch
        %1647 = sbr.rel (%p1645) target = $region60
      $region59: #{tpu_custom_call.1} parent=5 // pred_region
        %s1648 = ssub.s32 %s18, 2
        // Predicated region
        $region61: #{tpu_custom_call.1} parent=59 // pred_check
          %p1649 = pneg %p165
        $region62: #{tpu_custom_call.1} parent=59 // pred_check_branch
          %1651 = sbr.rel (%p1649) target = $region64
        $region63: #{tpu_custom_call.1} parent=59 // pred_region
          %s1652 = sand.u32 %s150, 1
          %s1653 = scalar_lea.sflag [#allocation4], %s1652
          %s1654 = sand.u32 %s150, 1
          %s1655 = smul.addr %s1654, 256
          %s1656 = scalar_lea.vmem [#allocation10], %s1655
          %1657 = dma.done %s1653, 4096
        $region64: #{tpu_custom_call.1} parent=59 // pred_fallthru
          _
      $region60: #{tpu_custom_call.1} parent=5 // pred_fallthru
        _
    $region6: #{tpu_custom_call.1} parent=1 // loop_footer
      %s22 = sadd.s32 1, %s18
    $region7: #{tpu_custom_call.1} parent=1 // loop_footer_branch
      %17 = sbr.rel target = $region3
    $region8: #{tpu_custom_call.1} parent=1 // loop_exit
      _
    %1658 = vsyncpa [#allocation3], 1
    %s1659 = scalar_lea.sflag [#allocation3], 1
    %1660 = vsyncpa %s1659, 1
    %1661 = vsyncpa [#allocation6], 1
    %1662 = vsyncpa [#allocation9], 1
    %1663 = vsyncpa [#allocation4], 1
    %s1664 = scalar_lea.sflag [#allocation4], 1
    %1665 = vsyncpa %s1664, 1

</llo_original>
